<compile_context>
chip_gen: v7x
topology: tpu7x:2x2x1
jax: 0.10.0
libtpu: 0.0.40
codegen_flags: <defaults>
</compile_context>

<pallas_src>
from functools import partial

import jax
import jax.numpy as jnp
from jax.experimental import pallas as pl
from jax.experimental.pallas import tpu as pltpu

LN_EPS = 1e-5


def _encoder_layer_kernel(x_ref, wqkv_ref, bqkv_ref, wo_h_ref, bo_ref,
                          w1_ref, b1_ref, w2_ref, b2_ref,
                          g1_ref, be1_ref, g2_ref, be2_ref,
                          out_ref, *, nhead: int):
    x = x_ref[...].astype(jnp.float32)            # (S, D)
    S, D = x.shape
    Dh = D // nhead

    def layer_norm(v, g, b):
        mu = jnp.mean(v, axis=-1, keepdims=True)
        var = jnp.mean((v - mu) ** 2, axis=-1, keepdims=True)
        return (v - mu) * jax.lax.rsqrt(var + LN_EPS) * g + b

    # ---------------- self-attention block (pre-norm) ----------------
    xn = layer_norm(x, g1_ref[0], be1_ref[0]).astype(jnp.bfloat16)
    # Single big QKV projection; weight is pre-transposed (D, 3D) bf16 with the
    # 1/sqrt(Dh) scale already folded into the q columns / bias.
    qkv = jnp.dot(xn, wqkv_ref[...],
                  preferred_element_type=jnp.float32) + bqkv_ref[0]
    q = qkv[:, :D]
    k = qkv[:, D:2 * D]
    v = qkv[:, 2 * D:]

    attn = jnp.zeros((S, D), jnp.float32)
    for h in range(nhead):                        # static, unrolled
        sl = slice(h * Dh, (h + 1) * Dh)
        qh = q[:, sl].astype(jnp.bfloat16)
        kh = k[:, sl].astype(jnp.bfloat16)
        vh = v[:, sl].astype(jnp.bfloat16)
        # q @ k.T without materialising a transpose (trans_b contraction).
        s = jax.lax.dot_general(qh, kh, (((1,), (1,)), ((), ())),
                                preferred_element_type=jnp.float32)
        s = s - jnp.max(s, axis=-1, keepdims=True)
        p = jnp.exp(s)
        p = p * pl.reciprocal(jnp.sum(p, axis=-1, keepdims=True), approx=True)
        o_h = jnp.dot(p.astype(jnp.bfloat16), vh,
                      preferred_element_type=jnp.float32)          # (S, Dh)
        # Fold this head straight into the output projection (no concatenate).
        attn = attn + jnp.dot(o_h.astype(jnp.bfloat16), wo_h_ref[h],
                              preferred_element_type=jnp.float32)  # (S, D)
    # dropout1 == identity (eval)
    x = x + attn + bo_ref[0]

    # ---------------- feed-forward block (pre-norm) ----------------
    xn2 = layer_norm(x, g2_ref[0], be2_ref[0]).astype(jnp.bfloat16)
    h1 = jnp.dot(xn2, w1_ref[...],
                 preferred_element_type=jnp.float32) + b1_ref[0]
    h1 = jnp.maximum(h1, 0.0).astype(jnp.bfloat16)                 # ReLU
    ff = jnp.dot(h1, w2_ref[...],
                 preferred_element_type=jnp.float32) + b2_ref[0]
    # dropout / dropout2 == identity (eval)
    out_ref[...] = (x + ff).astype(out_ref.dtype)


def transformer_encoder_layer(x_sbd, params, *, nhead: int):
    """x_sbd: (seq, batch, d_model)  — PyTorch batch_first=False layout."""
    S, B, D = x_sbd.shape
    F = params["w1"].shape[0]
    assert D % nhead == 0
    Dh = D // nhead
    scale = 1.0 / (Dh ** 0.5)

    x_bsd = jnp.transpose(x_sbd, (1, 0, 2))       # (B, S, D)

    bf16, f32 = jnp.bfloat16, jnp.float32
    row = lambda v: v.reshape(1, -1).astype(f32)  # 1-D params -> (1, N) f32

    # ---- trace-time parameter prep (free): transpose, scale-fold, bf16 ----
    wqkv = params["wqkv"].astype(f32)                         # (3D, D)
    wqkv_t = jnp.concatenate(
        [wqkv[:D].T * scale, wqkv[D:2 * D].T, wqkv[2 * D:].T],
        axis=1).astype(bf16)                                  # (D, 3D)
    bqkv = jnp.concatenate(
        [params["bqkv"][:D] * scale, params["bqkv"][D:]]
    ).reshape(1, -1).astype(f32)                              # (1, 3D)
    wo_h = params["wo"].T.reshape(nhead, Dh, D).astype(bf16)  # (H, Dh, D)
    w1_t = params["w1"].T.astype(bf16)                        # (D, F)
    w2_t = params["w2"].T.astype(bf16)                        # (F, D)

    def const_spec(shape):
        zeros = (0,) * len(shape)
        return pl.BlockSpec(shape, lambda b, _z=zeros: _z)

    kernel = partial(_encoder_layer_kernel, nhead=nhead)
    out_bsd = pl.pallas_call(
        kernel,
        out_shape=jax.ShapeDtypeStruct((B, S, D), x_bsd.dtype),
        grid_spec=pltpu.PrefetchScalarGridSpec(
            num_scalar_prefetch=0,
            grid=(B,),
            in_specs=[
                pl.BlockSpec((pl.Squeezed(), S, D), lambda b: (b, 0, 0)),  # x
                const_spec((D, 3 * D)),       # qkv weight (pre-T, q-scaled, bf16)
                const_spec((1, 3 * D)),       # qkv bias (q-scaled)
                const_spec((nhead, Dh, D)),   # out_proj weight, head-blocked bf16
                const_spec((1, D)),           # out_proj bias
                const_spec((D, F)),           # linear1 weight (pre-T, bf16)
                const_spec((1, F)),           # linear1 bias
                const_spec((F, D)),           # linear2 weight (pre-T, bf16)
                const_spec((1, D)),           # linear2 bias
                const_spec((1, D)),           # norm1 gamma
                const_spec((1, D)),           # norm1 beta
                const_spec((1, D)),           # norm2 gamma
                const_spec((1, D)),           # norm2 beta
            ],
            out_specs=pl.BlockSpec((pl.Squeezed(), S, D), lambda b: (b, 0, 0)),
        ),
        compiler_params=pltpu.CompilerParams(
            dimension_semantics=("parallel",),
            vmem_limit_bytes=48 * 1024 * 1024),
    )(x_bsd,
      wqkv_t, bqkv, wo_h, row(params["bo"]),
      w1_t, row(params["b1"]), w2_t, row(params["b2"]),
      row(params["g1"]), row(params["be1"]),
      row(params["g2"]), row(params["be2"]))

    return jnp.transpose(out_bsd, (1, 0, 2))      # back to (S, B, D)


# ---------------- pure-JAX f32 reference (for verification) ----------------
def reference_forward(x_sbd, params, *, nhead: int):
    S, B, D = x_sbd.shape
    Dh = D // nhead
    x = x_sbd.astype(jnp.float32)

    def ln(v, g, b):
        mu = jnp.mean(v, axis=-1, keepdims=True)
        var = jnp.mean((v - mu) ** 2, axis=-1, keepdims=True)
        return (v - mu) / jnp.sqrt(var + LN_EPS) * g + b

    # self-attention block
    xn = ln(x, params["g1"], params["be1"])                        # (S,B,D)
    qkv = jnp.einsum("sbd,ed->sbe", xn, params["wqkv"]) + params["bqkv"]
    q, k, v = qkv[..., :D], qkv[..., D:2 * D], qkv[..., 2 * D:]

    def split_heads(t):   # (S,B,D) -> (B,H,S,Dh)
        return jnp.transpose(t.reshape(S, B, nhead, Dh), (1, 2, 0, 3))

    qh, kh, vh = split_heads(q), split_heads(k), split_heads(v)
    s = jnp.einsum("bhqd,bhkd->bhqk", qh, kh) / (Dh ** 0.5)
    p = jax.nn.softmax(s, axis=-1)
    o = jnp.einsum("bhqk,bhkd->bhqd", p, vh)                       # (B,H,S,Dh)
    o = jnp.transpose(o, (2, 0, 1, 3)).reshape(S, B, D)
    o = jnp.einsum("sbd,ed->sbe", o, params["wo"]) + params["bo"]
    x = x + o

    # feed-forward block
    xn2 = ln(x, params["g2"], params["be2"])
    h1 = jnp.maximum(jnp.einsum("sbd,fd->sbf", xn2, params["w1"])
                     + params["b1"], 0.0)
    ff = jnp.einsum("sbf,df->sbd", h1, params["w2"]) + params["b2"]
    return x + ff


def make_params(key, d_model, nhead, dim_feedforward):
    ks = jax.random.split(key, 8)
    s = 0.1
    return {
        "wqkv": s * jax.random.normal(ks[0], (3 * d_model, d_model), jnp.float32),
        "bqkv": s * jax.random.normal(ks[1], (3 * d_model,), jnp.float32),
        "wo":   s * jax.random.normal(ks[2], (d_model, d_model), jnp.float32),
        "bo":   s * jax.random.normal(ks[3], (d_model,), jnp.float32),
        "w1":   s * jax.random.normal(ks[4], (dim_feedforward, d_model), jnp.float32),
        "b1":   s * jax.random.normal(ks[5], (dim_feedforward,), jnp.float32),
        "w2":   s * jax.random.normal(ks[6], (d_model, dim_feedforward), jnp.float32),
        "b2":   s * jax.random.normal(ks[7], (d_model,), jnp.float32),
        "g1":   jnp.ones((d_model,), jnp.float32),
        "be1":  jnp.zeros((d_model,), jnp.float32),
        "g2":   jnp.ones((d_model,), jnp.float32),
        "be2":  jnp.zeros((d_model,), jnp.float32),
    }


if __name__ == "__main__":
    SEQ, BATCH, D_MODEL, NHEAD, DIM_FF = 8, 2, 32, 4, 64

    key = jax.random.PRNGKey(0)
    kx, kp = jax.random.split(key)
    x = jax.random.normal(kx, (SEQ, BATCH, D_MODEL), jnp.float32)
    params = make_params(kp, D_MODEL, NHEAD, DIM_FF)

    out = transformer_encoder_layer(x, params, nhead=NHEAD)
    out = jax.block_until_ready(out)

    ref = jax.block_until_ready(reference_forward(x, params, nhead=NHEAD))
    assert out.shape == (SEQ, BATCH, D_MODEL)
    # bf16 MXU operands + approx reciprocal -> relaxed tolerance vs. f32 ref.
    assert jnp.allclose(out, ref, rtol=5e-2, atol=5e-2), (
        float(jnp.max(jnp.abs(out - ref))))

    print("KERNEL_OK")
</pallas_src>

<mosaic_0001>
module attributes {stable_mosaic.version = 11 : i64} {
  func.func @_encoder_layer_kernel(%arg0: i32, %arg1: memref<1x8x32xf32, #tpu.memory_space<vmem>>, %arg2: memref<32x96xbf16, #tpu.memory_space<vmem>>, %arg3: memref<1x96xf32, #tpu.memory_space<vmem>>, %arg4: memref<4x8x32xbf16, #tpu.memory_space<vmem>>, %arg5: memref<1x32xf32, #tpu.memory_space<vmem>>, %arg6: memref<32x64xbf16, #tpu.memory_space<vmem>>, %arg7: memref<1x64xf32, #tpu.memory_space<vmem>>, %arg8: memref<64x32xbf16, #tpu.memory_space<vmem>>, %arg9: memref<1x32xf32, #tpu.memory_space<vmem>>, %arg10: memref<1x32xf32, #tpu.memory_space<vmem>>, %arg11: memref<1x32xf32, #tpu.memory_space<vmem>>, %arg12: memref<1x32xf32, #tpu.memory_space<vmem>>, %arg13: memref<1x32xf32, #tpu.memory_space<vmem>>, %arg14: memref<1x8x32xf32, #tpu.memory_space<vmem>>) attributes {dimension_semantics = [#tpu.dimension_semantics<parallel>], iteration_bounds = array<i64: 2>, scalar_prefetch = 0 : i64, scratch_operands = 0 : i64, tpu.core_type = #tpu.core_type<tc>, window_params = [{transform_indices = @transform_0, window_bounds = array<i64: 1, 8, 32>}, {pipeline_mode = #tpu.pipeline_mode<synchronous>, transform_indices = @transform_1, window_bounds = array<i64: 32, 96>}, {pipeline_mode = #tpu.pipeline_mode<synchronous>, transform_indices = @transform_2, window_bounds = array<i64: 1, 96>}, {pipeline_mode = #tpu.pipeline_mode<synchronous>, transform_indices = @transform_3, window_bounds = array<i64: 4, 8, 32>}, {pipeline_mode = #tpu.pipeline_mode<synchronous>, transform_indices = @transform_4, window_bounds = array<i64: 1, 32>}, {pipeline_mode = #tpu.pipeline_mode<synchronous>, transform_indices = @transform_5, window_bounds = array<i64: 32, 64>}, {pipeline_mode = #tpu.pipeline_mode<synchronous>, transform_indices = @transform_6, window_bounds = array<i64: 1, 64>}, {pipeline_mode = #tpu.pipeline_mode<synchronous>, transform_indices = @transform_7, window_bounds = array<i64: 64, 32>}, {pipeline_mode = #tpu.pipeline_mode<synchronous>, transform_indices = @transform_8, window_bounds = array<i64: 1, 32>}, {pipeline_mode = #tpu.pipeline_mode<synchronous>, transform_indices = @transform_9, window_bounds = array<i64: 1, 32>}, {pipeline_mode = #tpu.pipeline_mode<synchronous>, transform_indices = @transform_10, window_bounds = array<i64: 1, 32>}, {pipeline_mode = #tpu.pipeline_mode<synchronous>, transform_indices = @transform_11, window_bounds = array<i64: 1, 32>}, {pipeline_mode = #tpu.pipeline_mode<synchronous>, transform_indices = @transform_12, window_bounds = array<i64: 1, 32>}, {transform_indices = @transform_13, window_bounds = array<i64: 1, 8, 32>}]} {
    %c0 = arith.constant 0 : index
    %c0_0 = arith.constant 0 : index
    %c0_1 = arith.constant 0 : index
    %0 = vector.load %arg1[%c0, %c0_0, %c0_1] : memref<1x8x32xf32, #tpu.memory_space<vmem>>, vector<1x8x32xf32>
    %1 = vector.shape_cast %0 : vector<1x8x32xf32> to vector<8x32xf32>
    %c0_2 = arith.constant 0 : index
    %c0_3 = arith.constant 0 : index
    %2 = vector.load %arg10[%c0_2, %c0_3] : memref<1x32xf32, #tpu.memory_space<vmem>>, vector<1x32xf32>
    %3 = vector.shape_cast %2 : vector<1x32xf32> to vector<32xf32>
    %c0_4 = arith.constant 0 : index
    %c0_5 = arith.constant 0 : index
    %4 = vector.load %arg11[%c0_4, %c0_5] : memref<1x32xf32, #tpu.memory_space<vmem>>, vector<1x32xf32>
    %5 = vector.shape_cast %4 : vector<1x32xf32> to vector<32xf32>
    %cst = arith.constant dense<0.000000e+00> : vector<8xf32>
    %6 = vector.multi_reduction <add>, %1, %cst [1] : vector<8x32xf32> to vector<8xf32>
    %7 = vector.shape_cast %6 : vector<8xf32> to vector<8x1xf32>
    %cst_6 = arith.constant 3.200000e+01 : f32
    %8 = vector.broadcast %cst_6 : f32 to vector<8x1xf32>
    %9 = arith.divf %7, %8 : vector<8x1xf32>
    %10 = vector.broadcast %9 : vector<8x1xf32> to vector<8x32xf32>
    %11 = arith.subf %1, %10 : vector<8x32xf32>
    %12 = arith.mulf %11, %11 : vector<8x32xf32>
    %cst_7 = arith.constant dense<0.000000e+00> : vector<8xf32>
    %13 = vector.multi_reduction <add>, %12, %cst_7 [1] : vector<8x32xf32> to vector<8xf32>
    %14 = vector.shape_cast %13 : vector<8xf32> to vector<8x1xf32>
    %cst_8 = arith.constant 3.200000e+01 : f32
    %15 = vector.broadcast %cst_8 : f32 to vector<8x1xf32>
    %16 = arith.divf %14, %15 : vector<8x1xf32>
    %17 = vector.broadcast %9 : vector<8x1xf32> to vector<8x32xf32>
    %18 = arith.subf %1, %17 : vector<8x32xf32>
    %cst_9 = arith.constant 9.99999974E-6 : f32
    %19 = vector.broadcast %cst_9 : f32 to vector<8x1xf32>
    %20 = arith.addf %16, %19 : vector<8x1xf32>
    %21 = math.rsqrt %20 : vector<8x1xf32>
    %22 = vector.broadcast %21 : vector<8x1xf32> to vector<8x32xf32>
    %23 = arith.mulf %18, %22 : vector<8x32xf32>
    %24 = vector.shape_cast %3 : vector<32xf32> to vector<1x32xf32>
    %25 = vector.broadcast %24 : vector<1x32xf32> to vector<8x32xf32>
    %26 = arith.mulf %23, %25 : vector<8x32xf32>
    %27 = vector.shape_cast %5 : vector<32xf32> to vector<1x32xf32>
    %28 = vector.broadcast %27 : vector<1x32xf32> to vector<8x32xf32>
    %29 = arith.addf %26, %28 : vector<8x32xf32>
    %30 = arith.truncf %29 : vector<8x32xf32> to vector<8x32xbf16>
    %c0_10 = arith.constant 0 : index
    %c0_11 = arith.constant 0 : index
    %31 = vector.load %arg2[%c0_10, %c0_11] : memref<32x96xbf16, #tpu.memory_space<vmem>>, vector<32x96xbf16>
    %cst_12 = arith.constant dense<0.000000e+00> : vector<8x96xf32>
    %32 = tpu.matmul %30, %31, %cst_12 {dimension_numbers = #tpu.dot_dimension_numbers<[1], [0], [0], [1], [0, 0, 1, 1], [], []>} : vector<8x32xbf16>, vector<32x96xbf16>, vector<8x96xf32> -> vector<8x96xf32>
    %c0_13 = arith.constant 0 : index
    %c0_14 = arith.constant 0 : index
    %33 = vector.load %arg3[%c0_13, %c0_14] : memref<1x96xf32, #tpu.memory_space<vmem>>, vector<1x96xf32>
    %34 = vector.shape_cast %33 : vector<1x96xf32> to vector<96xf32>
    %35 = vector.shape_cast %34 : vector<96xf32> to vector<1x96xf32>
    %36 = vector.broadcast %35 : vector<1x96xf32> to vector<8x96xf32>
    %37 = arith.addf %32, %36 : vector<8x96xf32>
    %38 = vector.extract_strided_slice %37 {offsets = [0, 0], sizes = [8, 32], strides = [1, 1]} : vector<8x96xf32> to vector<8x32xf32>
    %39 = vector.extract_strided_slice %37 {offsets = [0, 32], sizes = [8, 32], strides = [1, 1]} : vector<8x96xf32> to vector<8x32xf32>
    %40 = vector.extract_strided_slice %37 {offsets = [0, 64], sizes = [8, 32], strides = [1, 1]} : vector<8x96xf32> to vector<8x32xf32>
    %cst_15 = arith.constant 0.000000e+00 : f32
    %41 = vector.broadcast %cst_15 : f32 to vector<8x32xf32>
    %42 = vector.extract_strided_slice %38 {offsets = [0, 0], sizes = [8, 8], strides = [1, 1]} : vector<8x32xf32> to vector<8x8xf32>
    %43 = arith.truncf %42 : vector<8x8xf32> to vector<8x8xbf16>
    %44 = vector.extract_strided_slice %39 {offsets = [0, 0], sizes = [8, 8], strides = [1, 1]} : vector<8x32xf32> to vector<8x8xf32>
    %45 = arith.truncf %44 : vector<8x8xf32> to vector<8x8xbf16>
    %46 = vector.extract_strided_slice %40 {offsets = [0, 0], sizes = [8, 8], strides = [1, 1]} : vector<8x32xf32> to vector<8x8xf32>
    %47 = arith.truncf %46 : vector<8x8xf32> to vector<8x8xbf16>
    %cst_16 = arith.constant dense<0.000000e+00> : vector<8x8xf32>
    %48 = tpu.matmul %43, %45, %cst_16 {dimension_numbers = #tpu.dot_dimension_numbers<[1], [1], [0], [0], [0, 0, 1, 0], [], []>} : vector<8x8xbf16>, vector<8x8xbf16>, vector<8x8xf32> -> vector<8x8xf32>
    %cst_17 = arith.constant dense<0xFF800000> : vector<8xf32>
    %49 = vector.multi_reduction <maximumf>, %48, %cst_17 [1] : vector<8x8xf32> to vector<8xf32>
    %50 = vector.shape_cast %49 : vector<8xf32> to vector<8x1xf32>
    %51 = vector.broadcast %50 : vector<8x1xf32> to vector<8x8xf32>
    %52 = arith.subf %48, %51 : vector<8x8xf32>
    %53 = math.exp %52 : vector<8x8xf32>
    %cst_18 = arith.constant dense<0.000000e+00> : vector<8xf32>
    %54 = vector.multi_reduction <add>, %53, %cst_18 [1] : vector<8x8xf32> to vector<8xf32>
    %55 = vector.shape_cast %54 : vector<8xf32> to vector<8x1xf32>
    %56 = tpu.reciprocal %55 {approx = true} : vector<8x1xf32> -> vector<8x1xf32>
    %57 = vector.broadcast %56 : vector<8x1xf32> to vector<8x8xf32>
    %58 = arith.mulf %53, %57 : vector<8x8xf32>
    %59 = arith.truncf %58 : vector<8x8xf32> to vector<8x8xbf16>
    %cst_19 = arith.constant dense<0.000000e+00> : vector<8x8xf32>
    %60 = tpu.matmul %59, %47, %cst_19 {dimension_numbers = #tpu.dot_dimension_numbers<[1], [0], [0], [1], [0, 0, 1, 1], [], []>} : vector<8x8xbf16>, vector<8x8xbf16>, vector<8x8xf32> -> vector<8x8xf32>
    %61 = arith.truncf %60 : vector<8x8xf32> to vector<8x8xbf16>
    %c0_20 = arith.constant 0 : index
    %c0_21 = arith.constant 0 : index
    %c0_22 = arith.constant 0 : index
    %62 = vector.load %arg4[%c0_20, %c0_21, %c0_22] : memref<4x8x32xbf16, #tpu.memory_space<vmem>>, vector<1x8x32xbf16>
    %63 = vector.shape_cast %62 : vector<1x8x32xbf16> to vector<8x32xbf16>
    %cst_23 = arith.constant dense<0.000000e+00> : vector<8x32xf32>
    %64 = tpu.matmul %61, %63, %cst_23 {dimension_numbers = #tpu.dot_dimension_numbers<[1], [0], [0], [1], [0, 0, 1, 1], [], []>} : vector<8x8xbf16>, vector<8x32xbf16>, vector<8x32xf32> -> vector<8x32xf32>
    %65 = arith.addf %41, %64 : vector<8x32xf32>
    %66 = vector.extract_strided_slice %38 {offsets = [0, 8], sizes = [8, 8], strides = [1, 1]} : vector<8x32xf32> to vector<8x8xf32>
    %67 = arith.truncf %66 : vector<8x8xf32> to vector<8x8xbf16>
    %68 = vector.extract_strided_slice %39 {offsets = [0, 8], sizes = [8, 8], strides = [1, 1]} : vector<8x32xf32> to vector<8x8xf32>
    %69 = arith.truncf %68 : vector<8x8xf32> to vector<8x8xbf16>
    %70 = vector.extract_strided_slice %40 {offsets = [0, 8], sizes = [8, 8], strides = [1, 1]} : vector<8x32xf32> to vector<8x8xf32>
    %71 = arith.truncf %70 : vector<8x8xf32> to vector<8x8xbf16>
    %cst_24 = arith.constant dense<0.000000e+00> : vector<8x8xf32>
    %72 = tpu.matmul %67, %69, %cst_24 {dimension_numbers = #tpu.dot_dimension_numbers<[1], [1], [0], [0], [0, 0, 1, 0], [], []>} : vector<8x8xbf16>, vector<8x8xbf16>, vector<8x8xf32> -> vector<8x8xf32>
    %cst_25 = arith.constant dense<0xFF800000> : vector<8xf32>
    %73 = vector.multi_reduction <maximumf>, %72, %cst_25 [1] : vector<8x8xf32> to vector<8xf32>
    %74 = vector.shape_cast %73 : vector<8xf32> to vector<8x1xf32>
    %75 = vector.broadcast %74 : vector<8x1xf32> to vector<8x8xf32>
    %76 = arith.subf %72, %75 : vector<8x8xf32>
    %77 = math.exp %76 : vector<8x8xf32>
    %cst_26 = arith.constant dense<0.000000e+00> : vector<8xf32>
    %78 = vector.multi_reduction <add>, %77, %cst_26 [1] : vector<8x8xf32> to vector<8xf32>
    %79 = vector.shape_cast %78 : vector<8xf32> to vector<8x1xf32>
    %80 = tpu.reciprocal %79 {approx = true} : vector<8x1xf32> -> vector<8x1xf32>
    %81 = vector.broadcast %80 : vector<8x1xf32> to vector<8x8xf32>
    %82 = arith.mulf %77, %81 : vector<8x8xf32>
    %83 = arith.truncf %82 : vector<8x8xf32> to vector<8x8xbf16>
    %cst_27 = arith.constant dense<0.000000e+00> : vector<8x8xf32>
    %84 = tpu.matmul %83, %71, %cst_27 {dimension_numbers = #tpu.dot_dimension_numbers<[1], [0], [0], [1], [0, 0, 1, 1], [], []>} : vector<8x8xbf16>, vector<8x8xbf16>, vector<8x8xf32> -> vector<8x8xf32>
    %85 = arith.truncf %84 : vector<8x8xf32> to vector<8x8xbf16>
    %c1 = arith.constant 1 : index
    %c0_28 = arith.constant 0 : index
    %c0_29 = arith.constant 0 : index
    %86 = vector.load %arg4[%c1, %c0_28, %c0_29] : memref<4x8x32xbf16, #tpu.memory_space<vmem>>, vector<1x8x32xbf16>
    %87 = vector.shape_cast %86 : vector<1x8x32xbf16> to vector<8x32xbf16>
    %cst_30 = arith.constant dense<0.000000e+00> : vector<8x32xf32>
    %88 = tpu.matmul %85, %87, %cst_30 {dimension_numbers = #tpu.dot_dimension_numbers<[1], [0], [0], [1], [0, 0, 1, 1], [], []>} : vector<8x8xbf16>, vector<8x32xbf16>, vector<8x32xf32> -> vector<8x32xf32>
    %89 = arith.addf %65, %88 : vector<8x32xf32>
    %90 = vector.extract_strided_slice %38 {offsets = [0, 16], sizes = [8, 8], strides = [1, 1]} : vector<8x32xf32> to vector<8x8xf32>
    %91 = arith.truncf %90 : vector<8x8xf32> to vector<8x8xbf16>
    %92 = vector.extract_strided_slice %39 {offsets = [0, 16], sizes = [8, 8], strides = [1, 1]} : vector<8x32xf32> to vector<8x8xf32>
    %93 = arith.truncf %92 : vector<8x8xf32> to vector<8x8xbf16>
    %94 = vector.extract_strided_slice %40 {offsets = [0, 16], sizes = [8, 8], strides = [1, 1]} : vector<8x32xf32> to vector<8x8xf32>
    %95 = arith.truncf %94 : vector<8x8xf32> to vector<8x8xbf16>
    %cst_31 = arith.constant dense<0.000000e+00> : vector<8x8xf32>
    %96 = tpu.matmul %91, %93, %cst_31 {dimension_numbers = #tpu.dot_dimension_numbers<[1], [1], [0], [0], [0, 0, 1, 0], [], []>} : vector<8x8xbf16>, vector<8x8xbf16>, vector<8x8xf32> -> vector<8x8xf32>
    %cst_32 = arith.constant dense<0xFF800000> : vector<8xf32>
    %97 = vector.multi_reduction <maximumf>, %96, %cst_32 [1] : vector<8x8xf32> to vector<8xf32>
    %98 = vector.shape_cast %97 : vector<8xf32> to vector<8x1xf32>
    %99 = vector.broadcast %98 : vector<8x1xf32> to vector<8x8xf32>
    %100 = arith.subf %96, %99 : vector<8x8xf32>
    %101 = math.exp %100 : vector<8x8xf32>
    %cst_33 = arith.constant dense<0.000000e+00> : vector<8xf32>
    %102 = vector.multi_reduction <add>, %101, %cst_33 [1] : vector<8x8xf32> to vector<8xf32>
    %103 = vector.shape_cast %102 : vector<8xf32> to vector<8x1xf32>
    %104 = tpu.reciprocal %103 {approx = true} : vector<8x1xf32> -> vector<8x1xf32>
    %105 = vector.broadcast %104 : vector<8x1xf32> to vector<8x8xf32>
    %106 = arith.mulf %101, %105 : vector<8x8xf32>
    %107 = arith.truncf %106 : vector<8x8xf32> to vector<8x8xbf16>
    %cst_34 = arith.constant dense<0.000000e+00> : vector<8x8xf32>
    %108 = tpu.matmul %107, %95, %cst_34 {dimension_numbers = #tpu.dot_dimension_numbers<[1], [0], [0], [1], [0, 0, 1, 1], [], []>} : vector<8x8xbf16>, vector<8x8xbf16>, vector<8x8xf32> -> vector<8x8xf32>
    %109 = arith.truncf %108 : vector<8x8xf32> to vector<8x8xbf16>
    %c2 = arith.constant 2 : index
    %c0_35 = arith.constant 0 : index
    %c0_36 = arith.constant 0 : index
    %110 = vector.load %arg4[%c2, %c0_35, %c0_36] : memref<4x8x32xbf16, #tpu.memory_space<vmem>>, vector<1x8x32xbf16>
    %111 = vector.shape_cast %110 : vector<1x8x32xbf16> to vector<8x32xbf16>
    %cst_37 = arith.constant dense<0.000000e+00> : vector<8x32xf32>
    %112 = tpu.matmul %109, %111, %cst_37 {dimension_numbers = #tpu.dot_dimension_numbers<[1], [0], [0], [1], [0, 0, 1, 1], [], []>} : vector<8x8xbf16>, vector<8x32xbf16>, vector<8x32xf32> -> vector<8x32xf32>
    %113 = arith.addf %89, %112 : vector<8x32xf32>
    %114 = vector.extract_strided_slice %38 {offsets = [0, 24], sizes = [8, 8], strides = [1, 1]} : vector<8x32xf32> to vector<8x8xf32>
    %115 = arith.truncf %114 : vector<8x8xf32> to vector<8x8xbf16>
    %116 = vector.extract_strided_slice %39 {offsets = [0, 24], sizes = [8, 8], strides = [1, 1]} : vector<8x32xf32> to vector<8x8xf32>
    %117 = arith.truncf %116 : vector<8x8xf32> to vector<8x8xbf16>
    %118 = vector.extract_strided_slice %40 {offsets = [0, 24], sizes = [8, 8], strides = [1, 1]} : vector<8x32xf32> to vector<8x8xf32>
    %119 = arith.truncf %118 : vector<8x8xf32> to vector<8x8xbf16>
    %cst_38 = arith.constant dense<0.000000e+00> : vector<8x8xf32>
    %120 = tpu.matmul %115, %117, %cst_38 {dimension_numbers = #tpu.dot_dimension_numbers<[1], [1], [0], [0], [0, 0, 1, 0], [], []>} : vector<8x8xbf16>, vector<8x8xbf16>, vector<8x8xf32> -> vector<8x8xf32>
    %cst_39 = arith.constant dense<0xFF800000> : vector<8xf32>
    %121 = vector.multi_reduction <maximumf>, %120, %cst_39 [1] : vector<8x8xf32> to vector<8xf32>
    %122 = vector.shape_cast %121 : vector<8xf32> to vector<8x1xf32>
    %123 = vector.broadcast %122 : vector<8x1xf32> to vector<8x8xf32>
    %124 = arith.subf %120, %123 : vector<8x8xf32>
    %125 = math.exp %124 : vector<8x8xf32>
    %cst_40 = arith.constant dense<0.000000e+00> : vector<8xf32>
    %126 = vector.multi_reduction <add>, %125, %cst_40 [1] : vector<8x8xf32> to vector<8xf32>
    %127 = vector.shape_cast %126 : vector<8xf32> to vector<8x1xf32>
    %128 = tpu.reciprocal %127 {approx = true} : vector<8x1xf32> -> vector<8x1xf32>
    %129 = vector.broadcast %128 : vector<8x1xf32> to vector<8x8xf32>
    %130 = arith.mulf %125, %129 : vector<8x8xf32>
    %131 = arith.truncf %130 : vector<8x8xf32> to vector<8x8xbf16>
    %cst_41 = arith.constant dense<0.000000e+00> : vector<8x8xf32>
    %132 = tpu.matmul %131, %119, %cst_41 {dimension_numbers = #tpu.dot_dimension_numbers<[1], [0], [0], [1], [0, 0, 1, 1], [], []>} : vector<8x8xbf16>, vector<8x8xbf16>, vector<8x8xf32> -> vector<8x8xf32>
    %133 = arith.truncf %132 : vector<8x8xf32> to vector<8x8xbf16>
    %c3 = arith.constant 3 : index
    %c0_42 = arith.constant 0 : index
    %c0_43 = arith.constant 0 : index
    %134 = vector.load %arg4[%c3, %c0_42, %c0_43] : memref<4x8x32xbf16, #tpu.memory_space<vmem>>, vector<1x8x32xbf16>
    %135 = vector.shape_cast %134 : vector<1x8x32xbf16> to vector<8x32xbf16>
    %cst_44 = arith.constant dense<0.000000e+00> : vector<8x32xf32>
    %136 = tpu.matmul %133, %135, %cst_44 {dimension_numbers = #tpu.dot_dimension_numbers<[1], [0], [0], [1], [0, 0, 1, 1], [], []>} : vector<8x8xbf16>, vector<8x32xbf16>, vector<8x32xf32> -> vector<8x32xf32>
    %137 = arith.addf %113, %136 : vector<8x32xf32>
    %138 = arith.addf %1, %137 : vector<8x32xf32>
    %c0_45 = arith.constant 0 : index
    %c0_46 = arith.constant 0 : index
    %139 = vector.load %arg5[%c0_45, %c0_46] : memref<1x32xf32, #tpu.memory_space<vmem>>, vector<1x32xf32>
    %140 = vector.shape_cast %139 : vector<1x32xf32> to vector<32xf32>
    %141 = vector.shape_cast %140 : vector<32xf32> to vector<1x32xf32>
    %142 = vector.broadcast %141 : vector<1x32xf32> to vector<8x32xf32>
    %143 = arith.addf %138, %142 : vector<8x32xf32>
    %c0_47 = arith.constant 0 : index
    %c0_48 = arith.constant 0 : index
    %144 = vector.load %arg12[%c0_47, %c0_48] : memref<1x32xf32, #tpu.memory_space<vmem>>, vector<1x32xf32>
    %145 = vector.shape_cast %144 : vector<1x32xf32> to vector<32xf32>
    %c0_49 = arith.constant 0 : index
    %c0_50 = arith.constant 0 : index
    %146 = vector.load %arg13[%c0_49, %c0_50] : memref<1x32xf32, #tpu.memory_space<vmem>>, vector<1x32xf32>
    %147 = vector.shape_cast %146 : vector<1x32xf32> to vector<32xf32>
    %cst_51 = arith.constant dense<0.000000e+00> : vector<8xf32>
    %148 = vector.multi_reduction <add>, %143, %cst_51 [1] : vector<8x32xf32> to vector<8xf32>
    %149 = vector.shape_cast %148 : vector<8xf32> to vector<8x1xf32>
    %cst_52 = arith.constant 3.200000e+01 : f32
    %150 = vector.broadcast %cst_52 : f32 to vector<8x1xf32>
    %151 = arith.divf %149, %150 : vector<8x1xf32>
    %152 = vector.broadcast %151 : vector<8x1xf32> to vector<8x32xf32>
    %153 = arith.subf %143, %152 : vector<8x32xf32>
    %154 = arith.mulf %153, %153 : vector<8x32xf32>
    %cst_53 = arith.constant dense<0.000000e+00> : vector<8xf32>
    %155 = vector.multi_reduction <add>, %154, %cst_53 [1] : vector<8x32xf32> to vector<8xf32>
    %156 = vector.shape_cast %155 : vector<8xf32> to vector<8x1xf32>
    %cst_54 = arith.constant 3.200000e+01 : f32
    %157 = vector.broadcast %cst_54 : f32 to vector<8x1xf32>
    %158 = arith.divf %156, %157 : vector<8x1xf32>
    %159 = vector.broadcast %151 : vector<8x1xf32> to vector<8x32xf32>
    %160 = arith.subf %143, %159 : vector<8x32xf32>
    %cst_55 = arith.constant 9.99999974E-6 : f32
    %161 = vector.broadcast %cst_55 : f32 to vector<8x1xf32>
    %162 = arith.addf %158, %161 : vector<8x1xf32>
    %163 = math.rsqrt %162 : vector<8x1xf32>
    %164 = vector.broadcast %163 : vector<8x1xf32> to vector<8x32xf32>
    %165 = arith.mulf %160, %164 : vector<8x32xf32>
    %166 = vector.shape_cast %145 : vector<32xf32> to vector<1x32xf32>
    %167 = vector.broadcast %166 : vector<1x32xf32> to vector<8x32xf32>
    %168 = arith.mulf %165, %167 : vector<8x32xf32>
    %169 = vector.shape_cast %147 : vector<32xf32> to vector<1x32xf32>
    %170 = vector.broadcast %169 : vector<1x32xf32> to vector<8x32xf32>
    %171 = arith.addf %168, %170 : vector<8x32xf32>
    %172 = arith.truncf %171 : vector<8x32xf32> to vector<8x32xbf16>
    %c0_56 = arith.constant 0 : index
    %c0_57 = arith.constant 0 : index
    %173 = vector.load %arg6[%c0_56, %c0_57] : memref<32x64xbf16, #tpu.memory_space<vmem>>, vector<32x64xbf16>
    %cst_58 = arith.constant dense<0.000000e+00> : vector<8x64xf32>
    %174 = tpu.matmul %172, %173, %cst_58 {dimension_numbers = #tpu.dot_dimension_numbers<[1], [0], [0], [1], [0, 0, 1, 1], [], []>} : vector<8x32xbf16>, vector<32x64xbf16>, vector<8x64xf32> -> vector<8x64xf32>
    %c0_59 = arith.constant 0 : index
    %c0_60 = arith.constant 0 : index
    %175 = vector.load %arg7[%c0_59, %c0_60] : memref<1x64xf32, #tpu.memory_space<vmem>>, vector<1x64xf32>
    %176 = vector.shape_cast %175 : vector<1x64xf32> to vector<64xf32>
    %177 = vector.shape_cast %176 : vector<64xf32> to vector<1x64xf32>
    %178 = vector.broadcast %177 : vector<1x64xf32> to vector<8x64xf32>
    %179 = arith.addf %174, %178 : vector<8x64xf32>
    %cst_61 = arith.constant 0.000000e+00 : f32
    %180 = vector.broadcast %cst_61 : f32 to vector<8x64xf32>
    %181 = arith.maximumf %179, %180 : vector<8x64xf32>
    %182 = arith.truncf %181 : vector<8x64xf32> to vector<8x64xbf16>
    %c0_62 = arith.constant 0 : index
    %c0_63 = arith.constant 0 : index
    %183 = vector.load %arg8[%c0_62, %c0_63] : memref<64x32xbf16, #tpu.memory_space<vmem>>, vector<64x32xbf16>
    %cst_64 = arith.constant dense<0.000000e+00> : vector<8x32xf32>
    %184 = tpu.matmul %182, %183, %cst_64 {dimension_numbers = #tpu.dot_dimension_numbers<[1], [0], [0], [1], [0, 0, 1, 1], [], []>} : vector<8x64xbf16>, vector<64x32xbf16>, vector<8x32xf32> -> vector<8x32xf32>
    %c0_65 = arith.constant 0 : index
    %c0_66 = arith.constant 0 : index
    %185 = vector.load %arg9[%c0_65, %c0_66] : memref<1x32xf32, #tpu.memory_space<vmem>>, vector<1x32xf32>
    %186 = vector.shape_cast %185 : vector<1x32xf32> to vector<32xf32>
    %187 = vector.shape_cast %186 : vector<32xf32> to vector<1x32xf32>
    %188 = vector.broadcast %187 : vector<1x32xf32> to vector<8x32xf32>
    %189 = arith.addf %184, %188 : vector<8x32xf32>
    %190 = arith.addf %143, %189 : vector<8x32xf32>
    %c0_67 = arith.constant 0 : index
    %c0_68 = arith.constant 0 : index
    %c0_69 = arith.constant 0 : index
    %191 = vector.load %arg14[%c0_67, %c0_68, %c0_69] : memref<1x8x32xf32, #tpu.memory_space<vmem>>, vector<1x8x32xf32>
    %192 = vector.shape_cast %191 : vector<1x8x32xf32> to vector<8x32xf32>
    %193 = vector.shape_cast %190 : vector<8x32xf32> to vector<1x8x32xf32>
    tpu.vector_store %arg14[%c0_67, %c0_68, %c0_69], %193 {strides = array<i32>} : memref<1x8x32xf32, #tpu.memory_space<vmem>>, vector<1x8x32xf32>,
    return
  }
  func.func @transform_0(%arg0: i32) -> (i32, i32, i32) {
    %c0_i32 = arith.constant 0 : i32
    %c0_i32_0 = arith.constant 0 : i32
    %c0_i32_1 = arith.constant 0 : i32
    return %arg0, %c0_i32, %c0_i32_0 : i32, i32, i32
  }
  func.func @transform_1(%arg0: i32) -> (i32, i32) {
    %c0_i32 = arith.constant 0 : i32
    %c0_i32_0 = arith.constant 0 : i32
    %c0_i32_1 = arith.constant 0 : i32
    return %c0_i32, %c0_i32_0 : i32, i32
  }
  func.func @transform_2(%arg0: i32) -> (i32, i32) {
    %c0_i32 = arith.constant 0 : i32
    %c0_i32_0 = arith.constant 0 : i32
    %c0_i32_1 = arith.constant 0 : i32
    return %c0_i32, %c0_i32_0 : i32, i32
  }
  func.func @transform_3(%arg0: i32) -> (i32, i32, i32) {
    %c0_i32 = arith.constant 0 : i32
    %c0_i32_0 = arith.constant 0 : i32
    %c0_i32_1 = arith.constant 0 : i32
    %c0_i32_2 = arith.constant 0 : i32
    return %c0_i32, %c0_i32_0, %c0_i32_1 : i32, i32, i32
  }
  func.func @transform_4(%arg0: i32) -> (i32, i32) {
    %c0_i32 = arith.constant 0 : i32
    %c0_i32_0 = arith.constant 0 : i32
    %c0_i32_1 = arith.constant 0 : i32
    return %c0_i32, %c0_i32_0 : i32, i32
  }
  func.func @transform_5(%arg0: i32) -> (i32, i32) {
    %c0_i32 = arith.constant 0 : i32
    %c0_i32_0 = arith.constant 0 : i32
    %c0_i32_1 = arith.constant 0 : i32
    return %c0_i32, %c0_i32_0 : i32, i32
  }
  func.func @transform_6(%arg0: i32) -> (i32, i32) {
    %c0_i32 = arith.constant 0 : i32
    %c0_i32_0 = arith.constant 0 : i32
    %c0_i32_1 = arith.constant 0 : i32
    return %c0_i32, %c0_i32_0 : i32, i32
  }
  func.func @transform_7(%arg0: i32) -> (i32, i32) {
    %c0_i32 = arith.constant 0 : i32
    %c0_i32_0 = arith.constant 0 : i32
    %c0_i32_1 = arith.constant 0 : i32
    return %c0_i32, %c0_i32_0 : i32, i32
  }
  func.func @transform_8(%arg0: i32) -> (i32, i32) {
    %c0_i32 = arith.constant 0 : i32
    %c0_i32_0 = arith.constant 0 : i32
    %c0_i32_1 = arith.constant 0 : i32
    return %c0_i32, %c0_i32_0 : i32, i32
  }
  func.func @transform_9(%arg0: i32) -> (i32, i32) {
    %c0_i32 = arith.constant 0 : i32
    %c0_i32_0 = arith.constant 0 : i32
    %c0_i32_1 = arith.constant 0 : i32
    return %c0_i32, %c0_i32_0 : i32, i32
  }
  func.func @transform_10(%arg0: i32) -> (i32, i32) {
    %c0_i32 = arith.constant 0 : i32
    %c0_i32_0 = arith.constant 0 : i32
    %c0_i32_1 = arith.constant 0 : i32
    return %c0_i32, %c0_i32_0 : i32, i32
  }
  func.func @transform_11(%arg0: i32) -> (i32, i32) {
    %c0_i32 = arith.constant 0 : i32
    %c0_i32_0 = arith.constant 0 : i32
    %c0_i32_1 = arith.constant 0 : i32
    return %c0_i32, %c0_i32_0 : i32, i32
  }
  func.func @transform_12(%arg0: i32) -> (i32, i32) {
    %c0_i32 = arith.constant 0 : i32
    %c0_i32_0 = arith.constant 0 : i32
    %c0_i32_1 = arith.constant 0 : i32
    return %c0_i32, %c0_i32_0 : i32, i32
  }
  func.func @transform_13(%arg0: i32) -> (i32, i32, i32) {
    %c0_i32 = arith.constant 0 : i32
    %c0_i32_0 = arith.constant 0 : i32
    %c0_i32_1 = arith.constant 0 : i32
    return %arg0, %c0_i32, %c0_i32_0 : i32, i32, i32
  }
}

</mosaic_0001>

<llo_original>
// kernel: tpu_custom_call.1
$region0: #{tpu_custom_call.1}
  #allocation0 [shape = 'u32[]', space=smem, size = 0x4, offset = 0x4, fixed_abs, tag = 'smem constant byte address 0x4 - core index']
  #allocation1 [shape = 'u32[144,128]{1,0:T(1,128)}', space=vmem, size = 0x12000, scoped, tag = 'internal scratch']
  %s0 = inlined_call_operand.vmem [shape: f32[2,8,32], index: 0, kind: input, shape index: {}]
  %s1 = inlined_call_operand.vmem [shape: bf16[32,96], index: 1, kind: input, shape index: {}]
  %s2 = inlined_call_operand.vmem [shape: f32[1,96], index: 2, kind: input, shape index: {}]
  %s3 = inlined_call_operand.vmem [shape: bf16[4,8,32], index: 3, kind: input, shape index: {}]
  %s4 = inlined_call_operand.vmem [shape: f32[1,32], index: 4, kind: input, shape index: {}]
  %s5 = inlined_call_operand.hbm [shape: bf16[32,64], index: 5, kind: input, shape index: {}]
  %s6 = inlined_call_operand.vmem [shape: f32[1,64], index: 6, kind: input, shape index: {}]
  %s7 = inlined_call_operand.vmem [shape: bf16[64,32], index: 7, kind: input, shape index: {}]
  %s8 = inlined_call_operand.vmem [shape: f32[1,32], index: 8, kind: input, shape index: {}]
  %s9 = inlined_call_operand.vmem [shape: f32[1,32], index: 9, kind: input, shape index: {}]
  %s10 = inlined_call_operand.vmem [shape: f32[1,32], index: 10, kind: input, shape index: {}]
  %s11 = inlined_call_operand.vmem [shape: f32[1,32], index: 11, kind: input, shape index: {}]
  %s12 = inlined_call_operand.vmem [shape: f32[1,32], index: 12, kind: input, shape index: {}]
  %s13 = inlined_call_operand.hbm [shape: f32[2,8,32], index: 13, kind: output, shape index: {}]
  %s14 = sld [smem:[#allocation0]]
  $region89: #{tpu_custom_call.1} parent=0
    _
  %s16 = ssub.s32 1, %s14
  %s17 = scalar_select 0, %s16, %s14
  $region1: #{tpu_custom_call.1} parent=0
    #allocation2 [shape = 'u8[8192]{0}', space=vmem, size = 0x2000, scoped, tag = 'input window, operand 5, single buffered']
    #allocation3 [shape = 's32[2]{0}', space=sflag, size = 0x8, scoped, tag = 'scoped memory for tpu_custom_call.1']
    #allocation4 [shape = 's32[2]{0}', space=sflag, size = 0x8, scoped, tag = 'scoped memory for tpu_custom_call.1']
    #allocation5 [shape = 'u8[8192]{0}', space=vmem, size = 0x2000, scoped, tag = 'output window, operand 0']
    %18 = vsyncpa [#allocation3], 0
    %19 = vsyncpa [#allocation4], 0
    %s20 = scalar_lea.sflag [#allocation4], 1
    %21 = vsyncpa %s20, 0
    loop: start=0, step=1, limit=4
    $region2: #{tpu_custom_call.1} parent=1 // loop_pre_header
      _
    $region3: #{tpu_custom_call.1} parent=1 // loop_header
      %s23 = sphi 0, %s27
      %p24 = scmp.ge.s32.totalorder %s23, 4
      %s33 = sphi 0, %s35
      %s36 = sphi 0, %s33
      %s37 = sphi 0, %s36
      %s53 = sphi 0, %s37
      %s57 = sphi 0, %s57
      %s59 = sphi 0, %s57
      %s60 = sphi 0, %s59
      %s74 = sphi 0, %s60
      %s78 = sphi 0, %s78
      %s80 = sphi 0, %s78
      %s81 = sphi 0, %s80
      %s95 = sphi 0, %s81
      %s99 = sphi 0, %s99
      %s101 = sphi 0, %s99
      %s102 = sphi 0, %s101
      %s116 = sphi 0, %s102
      %s120 = sphi 0, %s120
      %s122 = sphi 0, %s120
      %s123 = sphi 0, %s122
      %s137 = sphi 0, %s123
      %s141 = sphi 0, %s141
      %s143 = sphi 0, %s141
      %s144 = sphi 0, %s143
      %s158 = sphi 0, %s144
      %s162 = sphi 0, %s162
      %s164 = sphi 0, %s162
      %s165 = sphi 0, %s164
      %s179 = sphi 0, %s165
      %s183 = sphi 0, %s183
      %s185 = sphi 0, %s183
      %s186 = sphi 0, %s185
      %s200 = sphi 0, %s186
      %s204 = sphi 0, %s204
      %s206 = sphi 0, %s204
      %s207 = sphi 0, %s206
      %s221 = sphi 0, %s207
      %s225 = sphi 0, %s225
      %s227 = sphi 0, %s225
      %s228 = sphi 0, %s227
      %s242 = sphi 0, %s228
      %s246 = sphi 0, %s246
      %s248 = sphi 0, %s246
      %s249 = sphi 0, %s248
      %s263 = sphi 0, %s249
      %s267 = sphi 0, %s267
      %s269 = sphi 0, %s267
      %s270 = sphi 0, %s269
      %s284 = sphi 0, %s270
      %s288 = sphi 0, %s288
      %s290 = sphi 0, %s288
      %s291 = sphi 0, %s290
      %s305 = sphi 0, %s291
      %s311 = sphi 0, %s313
      %s314 = sphi 0, %s311
      %s315 = sphi 0, %s314
      %s331 = sphi 0, %s315
    $region4: #{tpu_custom_call.1} parent=1 // loop_header_branch
      %26 = sbr.rel (%p24) target = $region8
    $region5: #{tpu_custom_call.1} parent=1 // loop_body
      %s28 = ssub.s32 %s23, 1
      %s29 = ssub.s32 %s23, 2
      %s30 = sadd.s32 %s23, 1
      %s31 = ssub.s32 %s23, %s30
      %p32 = scmp.eq.s32.totalorder %s31, 0
      %s34 = sadd.s32 %s33, 1
      %s35 = scalar_select %p32, %s33, %s34
      %p38 = pneg %p32
      %p39 = scmp.eq.s32.totalorder %s23, 1
      %p40 = por %p38, %p39
      %p41 = scmp.ne.s32.totalorder %s33, %s36
      %p42 = scmp.eq.s32.totalorder %s23, 0
      %p43 = por %p41, %p42
      %p44 = scmp.ne.s32.totalorder %s33, %s36
      %p45 = scmp.eq.s32.totalorder %s28, 1
      %p46 = por %p44, %p45
      %p47 = scmp.ne.s32.totalorder %s36, %s37
      %p48 = scmp.eq.s32.totalorder %s28, 0
      %p49 = por %p47, %p48
      %p50 = scmp.ne.s32.totalorder %s36, %s37
      %p51 = scmp.eq.s32.totalorder %s29, 1
      %p52 = por %p50, %p51
      %p54 = scmp.ne.s32.totalorder %s37, %s53
      %p55 = scmp.eq.s32.totalorder %s29, 0
      %p56 = por %p54, %p55
      %s58 = sadd.s32 %s57, 1
      %p61 = scmp.eq.s32.totalorder %s23, 1
      %p62 = scmp.ne.s32.totalorder %s57, %s59
      %p63 = scmp.eq.s32.totalorder %s23, 0
      %p64 = por %p62, %p63
      %p65 = scmp.ne.s32.totalorder %s57, %s59
      %p66 = scmp.eq.s32.totalorder %s28, 1
      %p67 = por %p65, %p66
      %p68 = scmp.ne.s32.totalorder %s59, %s60
      %p69 = scmp.eq.s32.totalorder %s28, 0
      %p70 = por %p68, %p69
      %p71 = scmp.ne.s32.totalorder %s59, %s60
      %p72 = scmp.eq.s32.totalorder %s29, 1
      %p73 = por %p71, %p72
      %p75 = scmp.ne.s32.totalorder %s60, %s74
      %p76 = scmp.eq.s32.totalorder %s29, 0
      %p77 = por %p75, %p76
      %s79 = sadd.s32 %s78, 1
      %p82 = scmp.eq.s32.totalorder %s23, 1
      %p83 = scmp.ne.s32.totalorder %s78, %s80
      %p84 = scmp.eq.s32.totalorder %s23, 0
      %p85 = por %p83, %p84
      %p86 = scmp.ne.s32.totalorder %s78, %s80
      %p87 = scmp.eq.s32.totalorder %s28, 1
      %p88 = por %p86, %p87
      %p89 = scmp.ne.s32.totalorder %s80, %s81
      %p90 = scmp.eq.s32.totalorder %s28, 0
      %p91 = por %p89, %p90
      %p92 = scmp.ne.s32.totalorder %s80, %s81
      %p93 = scmp.eq.s32.totalorder %s29, 1
      %p94 = por %p92, %p93
      %p96 = scmp.ne.s32.totalorder %s81, %s95
      %p97 = scmp.eq.s32.totalorder %s29, 0
      %p98 = por %p96, %p97
      %s100 = sadd.s32 %s99, 1
      %p103 = scmp.eq.s32.totalorder %s23, 1
      %p104 = scmp.ne.s32.totalorder %s99, %s101
      %p105 = scmp.eq.s32.totalorder %s23, 0
      %p106 = por %p104, %p105
      %p107 = scmp.ne.s32.totalorder %s99, %s101
      %p108 = scmp.eq.s32.totalorder %s28, 1
      %p109 = por %p107, %p108
      %p110 = scmp.ne.s32.totalorder %s101, %s102
      %p111 = scmp.eq.s32.totalorder %s28, 0
      %p112 = por %p110, %p111
      %p113 = scmp.ne.s32.totalorder %s101, %s102
      %p114 = scmp.eq.s32.totalorder %s29, 1
      %p115 = por %p113, %p114
      %p117 = scmp.ne.s32.totalorder %s102, %s116
      %p118 = scmp.eq.s32.totalorder %s29, 0
      %p119 = por %p117, %p118
      %s121 = sadd.s32 %s120, 1
      %p124 = scmp.eq.s32.totalorder %s23, 1
      %p125 = scmp.ne.s32.totalorder %s120, %s122
      %p126 = scmp.eq.s32.totalorder %s23, 0
      %p127 = por %p125, %p126
      %p128 = scmp.ne.s32.totalorder %s120, %s122
      %p129 = scmp.eq.s32.totalorder %s28, 1
      %p130 = por %p128, %p129
      %p131 = scmp.ne.s32.totalorder %s122, %s123
      %p132 = scmp.eq.s32.totalorder %s28, 0
      %p133 = por %p131, %p132
      %p134 = scmp.ne.s32.totalorder %s122, %s123
      %p135 = scmp.eq.s32.totalorder %s29, 1
      %p136 = por %p134, %p135
      %p138 = scmp.ne.s32.totalorder %s123, %s137
      %p139 = scmp.eq.s32.totalorder %s29, 0
      %p140 = por %p138, %p139
      %s142 = sadd.s32 %s141, 1
      %p145 = scmp.eq.s32.totalorder %s23, 1
      %p146 = scmp.ne.s32.totalorder %s141, %s143
      %p147 = scmp.eq.s32.totalorder %s23, 0
      %p148 = por %p146, %p147
      %p149 = scmp.ne.s32.totalorder %s141, %s143
      %p150 = scmp.eq.s32.totalorder %s28, 1
      %p151 = por %p149, %p150
      %p152 = scmp.ne.s32.totalorder %s143, %s144
      %p153 = scmp.eq.s32.totalorder %s28, 0
      %p154 = por %p152, %p153
      %p155 = scmp.ne.s32.totalorder %s143, %s144
      %p156 = scmp.eq.s32.totalorder %s29, 1
      %p157 = por %p155, %p156
      %p159 = scmp.ne.s32.totalorder %s144, %s158
      %p160 = scmp.eq.s32.totalorder %s29, 0
      %p161 = por %p159, %p160
      %s163 = sadd.s32 %s162, 1
      %p166 = scmp.eq.s32.totalorder %s23, 1
      %p167 = scmp.ne.s32.totalorder %s162, %s164
      %p168 = scmp.eq.s32.totalorder %s23, 0
      %p169 = por %p167, %p168
      %p170 = scmp.ne.s32.totalorder %s162, %s164
      %p171 = scmp.eq.s32.totalorder %s28, 1
      %p172 = por %p170, %p171
      %p173 = scmp.ne.s32.totalorder %s164, %s165
      %p174 = scmp.eq.s32.totalorder %s28, 0
      %p175 = por %p173, %p174
      %p176 = scmp.ne.s32.totalorder %s164, %s165
      %p177 = scmp.eq.s32.totalorder %s29, 1
      %p178 = por %p176, %p177
      %p180 = scmp.ne.s32.totalorder %s165, %s179
      %p181 = scmp.eq.s32.totalorder %s29, 0
      %p182 = por %p180, %p181
      %s184 = sadd.s32 %s183, 1
      %p187 = scmp.eq.s32.totalorder %s23, 1
      %p188 = scmp.ne.s32.totalorder %s183, %s185
      %p189 = scmp.eq.s32.totalorder %s23, 0
      %p190 = por %p188, %p189
      %p191 = scmp.ne.s32.totalorder %s183, %s185
      %p192 = scmp.eq.s32.totalorder %s28, 1
      %p193 = por %p191, %p192
      %p194 = scmp.ne.s32.totalorder %s185, %s186
      %p195 = scmp.eq.s32.totalorder %s28, 0
      %p196 = por %p194, %p195
      %p197 = scmp.ne.s32.totalorder %s185, %s186
      %p198 = scmp.eq.s32.totalorder %s29, 1
      %p199 = por %p197, %p198
      %p201 = scmp.ne.s32.totalorder %s186, %s200
      %p202 = scmp.eq.s32.totalorder %s29, 0
      %p203 = por %p201, %p202
      %s205 = sadd.s32 %s204, 1
      %p208 = scmp.eq.s32.totalorder %s23, 1
      %p209 = scmp.ne.s32.totalorder %s204, %s206
      %p210 = scmp.eq.s32.totalorder %s23, 0
      %p211 = por %p209, %p210
      %p212 = scmp.ne.s32.totalorder %s204, %s206
      %p213 = scmp.eq.s32.totalorder %s28, 1
      %p214 = por %p212, %p213
      %p215 = scmp.ne.s32.totalorder %s206, %s207
      %p216 = scmp.eq.s32.totalorder %s28, 0
      %p217 = por %p215, %p216
      %p218 = scmp.ne.s32.totalorder %s206, %s207
      %p219 = scmp.eq.s32.totalorder %s29, 1
      %p220 = por %p218, %p219
      %p222 = scmp.ne.s32.totalorder %s207, %s221
      %p223 = scmp.eq.s32.totalorder %s29, 0
      %p224 = por %p222, %p223
      %s226 = sadd.s32 %s225, 1
      %p229 = scmp.eq.s32.totalorder %s23, 1
      %p230 = scmp.ne.s32.totalorder %s225, %s227
      %p231 = scmp.eq.s32.totalorder %s23, 0
      %p232 = por %p230, %p231
      %p233 = scmp.ne.s32.totalorder %s225, %s227
      %p234 = scmp.eq.s32.totalorder %s28, 1
      %p235 = por %p233, %p234
      %p236 = scmp.ne.s32.totalorder %s227, %s228
      %p237 = scmp.eq.s32.totalorder %s28, 0
      %p238 = por %p236, %p237
      %p239 = scmp.ne.s32.totalorder %s227, %s228
      %p240 = scmp.eq.s32.totalorder %s29, 1
      %p241 = por %p239, %p240
      %p243 = scmp.ne.s32.totalorder %s228, %s242
      %p244 = scmp.eq.s32.totalorder %s29, 0
      %p245 = por %p243, %p244
      %s247 = sadd.s32 %s246, 1
      %p250 = scmp.eq.s32.totalorder %s23, 1
      %p251 = scmp.ne.s32.totalorder %s246, %s248
      %p252 = scmp.eq.s32.totalorder %s23, 0
      %p253 = por %p251, %p252
      %p254 = scmp.ne.s32.totalorder %s246, %s248
      %p255 = scmp.eq.s32.totalorder %s28, 1
      %p256 = por %p254, %p255
      %p257 = scmp.ne.s32.totalorder %s248, %s249
      %p258 = scmp.eq.s32.totalorder %s28, 0
      %p259 = por %p257, %p258
      %p260 = scmp.ne.s32.totalorder %s248, %s249
      %p261 = scmp.eq.s32.totalorder %s29, 1
      %p262 = por %p260, %p261
      %p264 = scmp.ne.s32.totalorder %s249, %s263
      %p265 = scmp.eq.s32.totalorder %s29, 0
      %p266 = por %p264, %p265
      %s268 = sadd.s32 %s267, 1
      %p271 = scmp.eq.s32.totalorder %s23, 1
      %p272 = scmp.ne.s32.totalorder %s267, %s269
      %p273 = scmp.eq.s32.totalorder %s23, 0
      %p274 = por %p272, %p273
      %p275 = scmp.ne.s32.totalorder %s267, %s269
      %p276 = scmp.eq.s32.totalorder %s28, 1
      %p277 = por %p275, %p276
      %p278 = scmp.ne.s32.totalorder %s269, %s270
      %p279 = scmp.eq.s32.totalorder %s28, 0
      %p280 = por %p278, %p279
      %p281 = scmp.ne.s32.totalorder %s269, %s270
      %p282 = scmp.eq.s32.totalorder %s29, 1
      %p283 = por %p281, %p282
      %p285 = scmp.ne.s32.totalorder %s270, %s284
      %p286 = scmp.eq.s32.totalorder %s29, 0
      %p287 = por %p285, %p286
      %s289 = sadd.s32 %s288, 1
      %p292 = scmp.eq.s32.totalorder %s23, 1
      %p293 = scmp.ne.s32.totalorder %s288, %s290
      %p294 = scmp.eq.s32.totalorder %s23, 0
      %p295 = por %p293, %p294
      %p296 = scmp.ne.s32.totalorder %s288, %s290
      %p297 = scmp.eq.s32.totalorder %s28, 1
      %p298 = por %p296, %p297
      %p299 = scmp.ne.s32.totalorder %s290, %s291
      %p300 = scmp.eq.s32.totalorder %s28, 0
      %p301 = por %p299, %p300
      %p302 = scmp.ne.s32.totalorder %s290, %s291
      %p303 = scmp.eq.s32.totalorder %s29, 1
      %p304 = por %p302, %p303
      %p306 = scmp.ne.s32.totalorder %s291, %s305
      %p307 = scmp.eq.s32.totalorder %s29, 0
      %p308 = por %p306, %p307
      %s309 = ssub.s32 %s23, %s30
      %p310 = scmp.eq.s32.totalorder %s309, 0
      %s312 = sadd.s32 %s311, 1
      %s313 = scalar_select %p310, %s311, %s312
      %p316 = pneg %p310
      %p317 = scmp.eq.s32.totalorder %s23, 1
      %p318 = por %p316, %p317
      %p319 = scmp.ne.s32.totalorder %s311, %s314
      %p320 = scmp.eq.s32.totalorder %s23, 0
      %p321 = por %p319, %p320
      %p322 = scmp.ne.s32.totalorder %s311, %s314
      %p323 = scmp.eq.s32.totalorder %s28, 1
      %p324 = por %p322, %p323
      %p325 = scmp.ne.s32.totalorder %s314, %s315
      %p326 = scmp.eq.s32.totalorder %s28, 0
      %p327 = por %p325, %p326
      %p328 = scmp.ne.s32.totalorder %s314, %s315
      %p329 = scmp.eq.s32.totalorder %s29, 1
      %p330 = por %p328, %p329
      %p332 = scmp.ne.s32.totalorder %s315, %s331
      %p333 = scmp.eq.s32.totalorder %s29, 0
      %p334 = por %p332, %p333
      %p335 = scmp.le.s32.totalorder 1, %s23
      %p336 = scmp.lt.s32.totalorder %s23, 3
      %p337 = pnand %p335, %p336
      %p338 = pneg %p337
      // Predicated region
      $region9: #{tpu_custom_call.1} parent=5 // pred_check
        _
      $region10: #{tpu_custom_call.1} parent=5 // pred_check_branch
        %340 = sbr.rel (%p337) target = $region12
      $region11: #{tpu_custom_call.1} parent=5 // pred_region
        %s341 = ssub.s32 %s23, 1
        // Predicated region
        $region13: #{tpu_custom_call.1} parent=11 // pred_check
          %p342 = pneg %p70
        $region14: #{tpu_custom_call.1} parent=11 // pred_check_branch
          %344 = sbr.rel (%p342) target = $region16
        $region15: #{tpu_custom_call.1} parent=11 // pred_region
          _
        $region16: #{tpu_custom_call.1} parent=11 // pred_fallthru
          _
        // Predicated region
        $region17: #{tpu_custom_call.1} parent=11 // pred_check
          %p345 = pneg %p91
        $region18: #{tpu_custom_call.1} parent=11 // pred_check_branch
          %347 = sbr.rel (%p345) target = $region20
        $region19: #{tpu_custom_call.1} parent=11 // pred_region
          _
        $region20: #{tpu_custom_call.1} parent=11 // pred_fallthru
          _
        // Predicated region
        $region21: #{tpu_custom_call.1} parent=11 // pred_check
          %p348 = pneg %p112
        $region22: #{tpu_custom_call.1} parent=11 // pred_check_branch
          %350 = sbr.rel (%p348) target = $region24
        $region23: #{tpu_custom_call.1} parent=11 // pred_region
          _
        $region24: #{tpu_custom_call.1} parent=11 // pred_fallthru
          _
        // Predicated region
        $region25: #{tpu_custom_call.1} parent=11 // pred_check
          %p351 = pneg %p133
        $region26: #{tpu_custom_call.1} parent=11 // pred_check_branch
          %353 = sbr.rel (%p351) target = $region28
        $region27: #{tpu_custom_call.1} parent=11 // pred_region
          _
        $region28: #{tpu_custom_call.1} parent=11 // pred_fallthru
          _
        // Predicated region
        $region29: #{tpu_custom_call.1} parent=11 // pred_check
          %p354 = pneg %p154
        $region30: #{tpu_custom_call.1} parent=11 // pred_check_branch
          %356 = sbr.rel (%p354) target = $region32
        $region31: #{tpu_custom_call.1} parent=11 // pred_region
          %s358 = ssub.s32 256, 256
          %359 = vsyncadd [#allocation3], %s358
          %s360 = sshll.u32 [#allocation2], 4
          %s361 = int_to_ptr.vmem [resolvable:$true] %s360
          %366 = dma.hbm_to_vmem [thread:$0]  %s5, 256, %s361, [#allocation3], 64, 64, 4
        $region32: #{tpu_custom_call.1} parent=11 // pred_fallthru
          _
        // Predicated region
        $region33: #{tpu_custom_call.1} parent=11 // pred_check
          %p367 = pneg %p175
        $region34: #{tpu_custom_call.1} parent=11 // pred_check_branch
          %369 = sbr.rel (%p367) target = $region36
        $region35: #{tpu_custom_call.1} parent=11 // pred_region
          _
        $region36: #{tpu_custom_call.1} parent=11 // pred_fallthru
          _
        // Predicated region
        $region37: #{tpu_custom_call.1} parent=11 // pred_check
          %p370 = pneg %p196
        $region38: #{tpu_custom_call.1} parent=11 // pred_check_branch
          %372 = sbr.rel (%p370) target = $region40
        $region39: #{tpu_custom_call.1} parent=11 // pred_region
          _
        $region40: #{tpu_custom_call.1} parent=11 // pred_fallthru
          _
        // Predicated region
        $region41: #{tpu_custom_call.1} parent=11 // pred_check
          %p373 = pneg %p217
        $region42: #{tpu_custom_call.1} parent=11 // pred_check_branch
          %375 = sbr.rel (%p373) target = $region44
        $region43: #{tpu_custom_call.1} parent=11 // pred_region
          _
        $region44: #{tpu_custom_call.1} parent=11 // pred_fallthru
          _
        // Predicated region
        $region45: #{tpu_custom_call.1} parent=11 // pred_check
          %p376 = pneg %p238
        $region46: #{tpu_custom_call.1} parent=11 // pred_check_branch
          %378 = sbr.rel (%p376) target = $region48
        $region47: #{tpu_custom_call.1} parent=11 // pred_region
          _
        $region48: #{tpu_custom_call.1} parent=11 // pred_fallthru
          _
        // Predicated region
        $region49: #{tpu_custom_call.1} parent=11 // pred_check
          %p379 = pneg %p259
        $region50: #{tpu_custom_call.1} parent=11 // pred_check_branch
          %381 = sbr.rel (%p379) target = $region52
        $region51: #{tpu_custom_call.1} parent=11 // pred_region
          _
        $region52: #{tpu_custom_call.1} parent=11 // pred_fallthru
          _
        // Predicated region
        $region53: #{tpu_custom_call.1} parent=11 // pred_check
          %p382 = pneg %p280
        $region54: #{tpu_custom_call.1} parent=11 // pred_check_branch
          %384 = sbr.rel (%p382) target = $region56
        $region55: #{tpu_custom_call.1} parent=11 // pred_region
          _
        $region56: #{tpu_custom_call.1} parent=11 // pred_fallthru
          _
        // Predicated region
        $region57: #{tpu_custom_call.1} parent=11 // pred_check
          %p385 = pneg %p301
        $region58: #{tpu_custom_call.1} parent=11 // pred_check_branch
          %387 = sbr.rel (%p385) target = $region60
        $region59: #{tpu_custom_call.1} parent=11 // pred_region
          _
        $region60: #{tpu_custom_call.1} parent=11 // pred_fallthru
          _
      $region12: #{tpu_custom_call.1} parent=5 // pred_fallthru
        _
      %p388 = scmp.lt.s32.totalorder %s23, 2
      // Predicated region
      $region61: #{tpu_custom_call.1} parent=5 // pred_check
        %p389 = pneg %p388
      $region62: #{tpu_custom_call.1} parent=5 // pred_check_branch
        %391 = sbr.rel (%p389) target = $region64
      $region63: #{tpu_custom_call.1} parent=5 // pred_region
        // Predicated region
        $region65: #{tpu_custom_call.1} parent=63 // pred_check
          %p392 = pneg %p43
        $region66: #{tpu_custom_call.1} parent=63 // pred_check_branch
          %394 = sbr.rel (%p392) target = $region68
        $region67: #{tpu_custom_call.1} parent=63 // pred_region
          %p395 = scmp.lt.s32.totalorder %s23, 1
          %s396 = scalar_select %p395, %s23, 1
          %s397 = smul.addr %s396, 8
          %s398 = scalar_lea.vmem %s0, %s397
        $region68: #{tpu_custom_call.1} parent=63 // pred_fallthru
          _
      $region64: #{tpu_custom_call.1} parent=5 // pred_fallthru
        _
      %p399 = scmp.le.s32.totalorder 1, %s23
      %p400 = scmp.lt.s32.totalorder %s23, 3
      %p401 = pnand %p399, %p400
      %p402 = pneg %p401
      // Predicated region
      $region69: #{tpu_custom_call.1} parent=5 // pred_check
        _
      $region70: #{tpu_custom_call.1} parent=5 // pred_check_branch
        %404 = sbr.rel (%p401) target = $region72
      $region71: #{tpu_custom_call.1} parent=5 // pred_region
        %s405 = ssub.s32 %s23, 1
        // Predicated region
        $region73: #{tpu_custom_call.1} parent=71 // pred_check
          %p406 = pneg %p154
        $region74: #{tpu_custom_call.1} parent=71 // pred_check_branch
          %408 = sbr.rel (%p406) target = $region76
        $region75: #{tpu_custom_call.1} parent=71 // pred_region
          %409 = dma.done [#allocation3], 256
        $region76: #{tpu_custom_call.1} parent=71 // pred_fallthru
          _
        %p410 = scmp.lt.s32.totalorder %s28, 1
        %s411 = scalar_select %p410, %s28, 1
        %s412 = smul.addr %s411, 8
        %s413 = scalar_lea.vmem %s0, %s412
        %p414 = pneg %p49
        %p415 = pneg %p46
        %p416 = pneg %p70
        %p417 = pneg %p67
        %p418 = pneg %p91
        %p419 = pneg %p88
        %p420 = pneg %p112
        %p421 = pneg %p109
        %p422 = pneg %p133
        %p423 = pneg %p130
        %p424 = pneg %p154
        %p425 = pneg %p151
        %p426 = pneg %p175
        %p427 = pneg %p172
        %p428 = pneg %p196
        %p429 = pneg %p193
        %p430 = pneg %p217
        %p431 = pneg %p214
        %p432 = pneg %p238
        %p433 = pneg %p235
        %p434 = pneg %p259
        %p435 = pneg %p256
        %p436 = pneg %p280
        %p437 = pneg %p277
        %p438 = pneg %p301
        %p439 = pneg %p298
        %p440 = pneg %p327
        %p441 = pneg %p324
        %s442 = sand.u32 %s314, 1
        %s443 = scalar_lea.sflag [#allocation4], %s442
        %s444 = sand.u32 %s314, 1
        %s445 = smul.addr %s444, 8
        %s446 = scalar_lea.vmem [#allocation5], %s445
        %p447 = scmp.lt.s32.totalorder %s28, 1
        %s448 = scalar_select %p447, %s28, 1
        %s449 = smul.addr %s448, 8
        %s450 = scalar_lea.vmem %s0, %s449
        %v452 = vld [vmem:[%s450] sm:$0xff]
        %v453 = vld [vmem:[%s9] sm:$0x1]
        %v454 = vld [vmem:[%s10] sm:$0x1]
        %vm455 = vcmask 261120
        %v456 = vsel %vm455, %v452, 0.0
        %457 = vadd.xlane.f32.xlu0 %v456
        %v458 = vpop.xlane.xlu0 %457
        %v459 = vrcp.pop 32.0
        %v460 = vmul.f32 %v458, %v459
        %v461 = vsub.f32 %v452, %v460
        %v462 = vmul.f32 %v461, %v461
        %v463 = vsel %vm455, %v462, 0.0
        %464 = vadd.xlane.f32.xlu0 %v463
        %v465 = vpop.xlane.xlu0 %464
        %v466 = vmul.f32 %v465, %v459
        %v467 = vadd.f32 %v466, 1e-05
        %v468 = vrsqrt.pop %v467
        %v469 = vmul.f32 %v461, %v468
        %v471 = vlaneseq
        %v472 = vshrl.u32 %v471, 7
        %v473 = vsub.s32 0, %v472
        %v474 = vrot.slane %v453, %v473
        %v476 = vmul.f32 %v469, %v474
        %v478 = vlaneseq
        %v479 = vshrl.u32 %v478, 7
        %v480 = vsub.s32 0, %v479
        %v481 = vrot.slane %v454, %v480
        %v483 = vadd.f32 %v476, %v481
        %v484 = vpack.c.bf16 %v483, %v483
        %v485 = vld [vmem:[%s1] sm:$0xf]
        %v486 = vld [vmem:[%s1 + $0x4] sm:$0xf]
        %v487 = vld [vmem:[%s1 + $0x8] sm:$0xf]
        %v488 = vld [vmem:[%s1 + $0xc] sm:$0xf]
        %v489 = vld [vmem:[%s2] sm:$0x1]
        %v491 = vlaneseq
        %v492 = vshrl.u32 %v491, 7
        %v493 = vsub.s32 0, %v492
        %v494 = vrot.slane %v489, %v493
        %v500 = vunpack.c.l.b16 %v485
        %v501 = vunpack.c.l.b16 %v486
        %v502 = vunpack.c.l.b16 %v487
        %v503 = vunpack.c.l.b16 %v488
        %v504 = vpack.c.b16 %v501, %v500
        %v505 = vpack.c.b16 %v503, %v502
        %v509 = vsel %vm455, %v484, 0
        %511 = vmatprep.subr.bf16.mxu0 0
        %512 = vmatpush1.bf16.msra.mxu0 %v504
        %513 = vmatprep.subr.bf16.mxu0 0
        %514 = vmatpush1.bf16.msra.mxu0 %v505
        %515 = vmatprep.subr.bf16.mxu0 0
        %516 = vmatpush1.bf16.msra.mxu0 0
        %517 = vmatprep.subr.bf16.mxu0 0
        %518 = vmatpush1.bf16.msra.mxu0 0
        %519 = vmatprep.subr.bf16.mxu0 0
        %520 = vmatpush1.bf16.msra.mxu0 0
        %521 = vmatprep.subr.bf16.mxu0 0
        %522 = vmatpush1.bf16.msra.mxu0 0
        %523 = vmatprep.subr.bf16.mxu0 0
        %524 = vmatpush1.bf16.msra.mxu0 0
        %525 = vmatprep.subr.bf16.mxu0 0
        %526 = vmatpush1.bf16.msra.mxu0 0
        %527 = vmatprep.subr.bf16.mxu0 0
        %528 = vmatpush1.bf16.msra.mxu0 0
        %529 = vmatprep.subr.bf16.mxu0 0
        %530 = vmatpush1.bf16.msra.mxu0 0
        %531 = vmatprep.subr.bf16.mxu0 0
        %532 = vmatpush1.bf16.msra.mxu0 0
        %533 = vmatprep.subr.bf16.mxu0 0
        %534 = vmatpush1.bf16.msra.mxu0 0
        %535 = vmatprep.subr.bf16.mxu0 0
        %536 = vmatpush1.bf16.msra.mxu0 0
        %537 = vmatprep.subr.bf16.mxu0 0
        %538 = vmatpush1.bf16.msra.mxu0 0
        %539 = vmatprep.subr.bf16.mxu0 0
        %540 = vmatpush1.bf16.msra.mxu0 0
        %541 = vmatprep.subr.bf16.mxu0 0
        %542 = vmatpush1.bf16.msra.mxu0 0
        %543 = vmatprep.mubr.bf16.mxu0 0
        %544 = vmatmul.mubr.bf16.gmra.mrb[0].mxu0 %v509
        %v545 = vpop.f32.mrb[0].mxu0
        %v546 = vadd.f32 %v494, %v545
        %v547 = vpop.f32.mrb[0].mxu0
        %v548 = vpop.f32.mrb[0].mxu0
        %v549 = vpop.f32.mrb[0].mxu0
        %550 = vdwg.mxu0
        %v551 = vpack.c.bf16 %v546, %v546
        %553 = vrot.lane.b32.xlu0 %v551, 96
        %v554 = vpop.permute.xlu0 %553
        %vm555 = vcmask 64512
        %v557 = vsel %vm555, %v551, 0
        %v560 = vsel %vm555, %v554, 0
        %562 = vmatprep.subr.bf16.mxu0 0
        %563 = vmatpush1.bf16.xpose.msra.mxu0 %v560
        %564 = vmatprep.subr.bf16.mxu0 0
        %565 = vmatpush1.bf16.xpose.msra.mxu0 0
        %566 = vmatprep.subr.bf16.mxu0 0
        %567 = vmatpush1.bf16.xpose.msra.mxu0 0
        %568 = vmatprep.subr.bf16.mxu0 0
        %569 = vmatpush1.bf16.xpose.msra.mxu0 0
        %570 = vmatprep.subr.bf16.mxu0 0
        %571 = vmatpush1.bf16.xpose.msra.mxu0 0
        %572 = vmatprep.subr.bf16.mxu0 0
        %573 = vmatpush1.bf16.xpose.msra.mxu0 0
        %574 = vmatprep.subr.bf16.mxu0 0
        %575 = vmatpush1.bf16.xpose.msra.mxu0 0
        %576 = vmatprep.subr.bf16.mxu0 0
        %577 = vmatpush1.bf16.xpose.msra.mxu0 0
        %578 = vmatprep.subr.bf16.mxu0 0
        %579 = vmatpush1.bf16.xpose.msra.mxu0 0
        %580 = vmatprep.subr.bf16.mxu0 0
        %581 = vmatpush1.bf16.xpose.msra.mxu0 0
        %582 = vmatprep.subr.bf16.mxu0 0
        %583 = vmatpush1.bf16.xpose.msra.mxu0 0
        %584 = vmatprep.subr.bf16.mxu0 0
        %585 = vmatpush1.bf16.xpose.msra.mxu0 0
        %586 = vmatprep.subr.bf16.mxu0 0
        %587 = vmatpush1.bf16.xpose.msra.mxu0 0
        %588 = vmatprep.subr.bf16.mxu0 0
        %589 = vmatpush1.bf16.xpose.msra.mxu0 0
        %590 = vmatprep.subr.bf16.mxu0 0
        %591 = vmatpush1.bf16.xpose.msra.mxu0 0
        %592 = vmatprep.subr.bf16.mxu0 0
        %593 = vmatpush1.bf16.xpose.msra.mxu0 0
        %594 = vmatprep.mubr.bf16.mxu0 0
        %595 = vmatmul.mubr.bf16.gmra.mrb[0].mxu0 %v557
        %v596 = vpop.f32.mrb[0].mxu0
        %v597 = vadd.f32 0.0, %v596
        %v598 = vpop.f32.mrb[0].mxu0
        %v599 = vpop.f32.mrb[0].mxu0
        %v600 = vpop.f32.mrb[0].mxu0
        %601 = vdwg.mxu0
        %v602 = vsel %vm555, %v597, -inf
        %603 = vmax.xlane.f32.xlu0 %v602
        %v604 = vpop.xlane.xlu0 %603
        %v605 = vsub.f32 %v597, %v604
        %v606 = vmul.f32 %v605, 1.442695
        %v607 = vpow.pop %v606
        %v608 = vsel %vm555, %v607, 0.0
        %609 = vadd.xlane.f32.xlu0 %v608
        %v610 = vpop.xlane.xlu0 %609
        %v611 = vrcp.pop %v610
        %v612 = vmul.f32 %v607, %v611
        %v613 = vpack.c.bf16 %v612, %v612
        %614 = vrot.lane.b32.xlu0 %v551, 64
        %v615 = vpop.permute.xlu0 %614
        %v617 = vsel %vm555, %v613, 0
        %vm619 = vcmask 1043456
        %v621 = vsel %vm619, %v615, 0
        %623 = vmatprep.subr.bf16.mxu0 0
        %624 = vmatpush1.bf16.msra.mxu0 %v621
        %625 = vmatprep.subr.bf16.mxu0 0
        %626 = vmatpush1.bf16.msra.mxu0 0
        %627 = vmatprep.subr.bf16.mxu0 0
        %628 = vmatpush1.bf16.msra.mxu0 0
        %629 = vmatprep.subr.bf16.mxu0 0
        %630 = vmatpush1.bf16.msra.mxu0 0
        %631 = vmatprep.subr.bf16.mxu0 0
        %632 = vmatpush1.bf16.msra.mxu0 0
        %633 = vmatprep.subr.bf16.mxu0 0
        %634 = vmatpush1.bf16.msra.mxu0 0
        %635 = vmatprep.subr.bf16.mxu0 0
        %636 = vmatpush1.bf16.msra.mxu0 0
        %637 = vmatprep.subr.bf16.mxu0 0
        %638 = vmatpush1.bf16.msra.mxu0 0
        %639 = vmatprep.subr.bf16.mxu0 0
        %640 = vmatpush1.bf16.msra.mxu0 0
        %641 = vmatprep.subr.bf16.mxu0 0
        %642 = vmatpush1.bf16.msra.mxu0 0
        %643 = vmatprep.subr.bf16.mxu0 0
        %644 = vmatpush1.bf16.msra.mxu0 0
        %645 = vmatprep.subr.bf16.mxu0 0
        %646 = vmatpush1.bf16.msra.mxu0 0
        %647 = vmatprep.subr.bf16.mxu0 0
        %648 = vmatpush1.bf16.msra.mxu0 0
        %649 = vmatprep.subr.bf16.mxu0 0
        %650 = vmatpush1.bf16.msra.mxu0 0
        %651 = vmatprep.subr.bf16.mxu0 0
        %652 = vmatpush1.bf16.msra.mxu0 0
        %653 = vmatprep.subr.bf16.mxu0 0
        %654 = vmatpush1.bf16.msra.mxu0 0
        %655 = vmatprep.mubr.bf16.mxu0 0
        %656 = vmatmul.mubr.bf16.gmra.mrb[0].mxu0 %v617
        %v657 = vpop.f32.mrb[0].mxu0
        %v658 = vadd.f32 0.0, %v657
        %v659 = vpop.f32.mrb[0].mxu0
        %v660 = vpop.f32.mrb[0].mxu0
        %v661 = vpop.f32.mrb[0].mxu0
        %662 = vdwg.mxu0
        %v663 = vpack.c.bf16 %v658, %v658
        %v664 = vld [vmem:[%s3] sm:$0xf]
        %665 = vrot.lane.b32.xlu0 %v551, 120
        %v666 = vpop.permute.xlu0 %665
        %667 = vrot.lane.b32.xlu0 %v551, 88
        %v668 = vpop.permute.xlu0 %667
        %v670 = vsel %vm555, %v666, 0
        %v673 = vsel %vm555, %v668, 0
        %675 = vmatprep.subr.bf16.mxu0 0
        %676 = vmatpush1.bf16.xpose.msra.mxu0 %v673
        %677 = vmatprep.subr.bf16.mxu0 0
        %678 = vmatpush1.bf16.xpose.msra.mxu0 0
        %679 = vmatprep.subr.bf16.mxu0 0
        %680 = vmatpush1.bf16.xpose.msra.mxu0 0
        %681 = vmatprep.subr.bf16.mxu0 0
        %682 = vmatpush1.bf16.xpose.msra.mxu0 0
        %683 = vmatprep.subr.bf16.mxu0 0
        %684 = vmatpush1.bf16.xpose.msra.mxu0 0
        %685 = vmatprep.subr.bf16.mxu0 0
        %686 = vmatpush1.bf16.xpose.msra.mxu0 0
        %687 = vmatprep.subr.bf16.mxu0 0
        %688 = vmatpush1.bf16.xpose.msra.mxu0 0
        %689 = vmatprep.subr.bf16.mxu0 0
        %690 = vmatpush1.bf16.xpose.msra.mxu0 0
        %691 = vmatprep.subr.bf16.mxu0 0
        %692 = vmatpush1.bf16.xpose.msra.mxu0 0
        %693 = vmatprep.subr.bf16.mxu0 0
        %694 = vmatpush1.bf16.xpose.msra.mxu0 0
        %695 = vmatprep.subr.bf16.mxu0 0
        %696 = vmatpush1.bf16.xpose.msra.mxu0 0
        %697 = vmatprep.subr.bf16.mxu0 0
        %698 = vmatpush1.bf16.xpose.msra.mxu0 0
        %699 = vmatprep.subr.bf16.mxu0 0
        %700 = vmatpush1.bf16.xpose.msra.mxu0 0
        %701 = vmatprep.subr.bf16.mxu0 0
        %702 = vmatpush1.bf16.xpose.msra.mxu0 0
        %703 = vmatprep.subr.bf16.mxu0 0
        %704 = vmatpush1.bf16.xpose.msra.mxu0 0
        %705 = vmatprep.subr.bf16.mxu0 0
        %706 = vmatpush1.bf16.xpose.msra.mxu0 0
        %707 = vmatprep.mubr.bf16.mxu0 0
        %708 = vmatmul.mubr.bf16.gmra.mrb[0].mxu0 %v670
        %v709 = vpop.f32.mrb[0].mxu0
        %v710 = vadd.f32 0.0, %v709
        %v711 = vpop.f32.mrb[0].mxu0
        %v712 = vpop.f32.mrb[0].mxu0
        %v713 = vpop.f32.mrb[0].mxu0
        %714 = vdwg.mxu0
        %v715 = vsel %vm555, %v710, -inf
        %716 = vmax.xlane.f32.xlu0 %v715
        %v717 = vpop.xlane.xlu0 %716
        %v718 = vsub.f32 %v710, %v717
        %v719 = vmul.f32 %v718, 1.442695
        %v720 = vpow.pop %v719
        %v721 = vsel %vm555, %v720, 0.0
        %722 = vadd.xlane.f32.xlu0 %v721
        %v723 = vpop.xlane.xlu0 %722
        %v724 = vrcp.pop %v723
        %v725 = vmul.f32 %v720, %v724
        %v726 = vpack.c.bf16 %v725, %v725
        %727 = vrot.lane.b32.xlu0 %v551, 56
        %v728 = vpop.permute.xlu0 %727
        %v730 = vsel %vm555, %v726, 0
        %v733 = vsel %vm619, %v728, 0
        %735 = vmatprep.subr.bf16.mxu0 0
        %736 = vmatpush1.bf16.msra.mxu0 %v733
        %737 = vmatprep.subr.bf16.mxu0 0
        %738 = vmatpush1.bf16.msra.mxu0 0
        %739 = vmatprep.subr.bf16.mxu0 0
        %740 = vmatpush1.bf16.msra.mxu0 0
        %741 = vmatprep.subr.bf16.mxu0 0
        %742 = vmatpush1.bf16.msra.mxu0 0
        %743 = vmatprep.subr.bf16.mxu0 0
        %744 = vmatpush1.bf16.msra.mxu0 0
        %745 = vmatprep.subr.bf16.mxu0 0
        %746 = vmatpush1.bf16.msra.mxu0 0
        %747 = vmatprep.subr.bf16.mxu0 0
        %748 = vmatpush1.bf16.msra.mxu0 0
        %749 = vmatprep.subr.bf16.mxu0 0
        %750 = vmatpush1.bf16.msra.mxu0 0
        %751 = vmatprep.subr.bf16.mxu0 0
        %752 = vmatpush1.bf16.msra.mxu0 0
        %753 = vmatprep.subr.bf16.mxu0 0
        %754 = vmatpush1.bf16.msra.mxu0 0
        %755 = vmatprep.subr.bf16.mxu0 0
        %756 = vmatpush1.bf16.msra.mxu0 0
        %757 = vmatprep.subr.bf16.mxu0 0
        %758 = vmatpush1.bf16.msra.mxu0 0
        %759 = vmatprep.subr.bf16.mxu0 0
        %760 = vmatpush1.bf16.msra.mxu0 0
        %761 = vmatprep.subr.bf16.mxu0 0
        %762 = vmatpush1.bf16.msra.mxu0 0
        %763 = vmatprep.subr.bf16.mxu0 0
        %764 = vmatpush1.bf16.msra.mxu0 0
        %765 = vmatprep.subr.bf16.mxu0 0
        %766 = vmatpush1.bf16.msra.mxu0 0
        %767 = vmatprep.mubr.bf16.mxu0 0
        %768 = vmatmul.mubr.bf16.gmra.mrb[0].mxu0 %v730
        %v769 = vpop.f32.mrb[0].mxu0
        %v770 = vadd.f32 0.0, %v769
        %v771 = vpop.f32.mrb[0].mxu0
        %v772 = vpop.f32.mrb[0].mxu0
        %v773 = vpop.f32.mrb[0].mxu0
        %774 = vdwg.mxu0
        %v775 = vpack.c.bf16 %v770, %v770
        %s776 = scalar_lea.vmem %s3, 4
        %v777 = vld [vmem:[%s776] sm:$0xf]
        %v779 = vsel %vm555, %v775, 0
        %v782 = vsel %vm619, %v777, 0
        %784 = vmatprep.subr.bf16.mxu0 0
        %785 = vmatpush1.bf16.msra.mxu0 %v782
        %786 = vmatprep.subr.bf16.mxu0 0
        %787 = vmatpush1.bf16.msra.mxu0 0
        %788 = vmatprep.subr.bf16.mxu0 0
        %789 = vmatpush1.bf16.msra.mxu0 0
        %790 = vmatprep.subr.bf16.mxu0 0
        %791 = vmatpush1.bf16.msra.mxu0 0
        %792 = vmatprep.subr.bf16.mxu0 0
        %793 = vmatpush1.bf16.msra.mxu0 0
        %794 = vmatprep.subr.bf16.mxu0 0
        %795 = vmatpush1.bf16.msra.mxu0 0
        %796 = vmatprep.subr.bf16.mxu0 0
        %797 = vmatpush1.bf16.msra.mxu0 0
        %798 = vmatprep.subr.bf16.mxu0 0
        %799 = vmatpush1.bf16.msra.mxu0 0
        %800 = vmatprep.subr.bf16.mxu0 0
        %801 = vmatpush1.bf16.msra.mxu0 0
        %802 = vmatprep.subr.bf16.mxu0 0
        %803 = vmatpush1.bf16.msra.mxu0 0
        %804 = vmatprep.subr.bf16.mxu0 0
        %805 = vmatpush1.bf16.msra.mxu0 0
        %806 = vmatprep.subr.bf16.mxu0 0
        %807 = vmatpush1.bf16.msra.mxu0 0
        %808 = vmatprep.subr.bf16.mxu0 0
        %809 = vmatpush1.bf16.msra.mxu0 0
        %810 = vmatprep.subr.bf16.mxu0 0
        %811 = vmatpush1.bf16.msra.mxu0 0
        %812 = vmatprep.subr.bf16.mxu0 0
        %813 = vmatpush1.bf16.msra.mxu0 0
        %814 = vmatprep.subr.bf16.mxu0 0
        %815 = vmatpush1.bf16.msra.mxu0 0
        %816 = vmatprep.mubr.bf16.mxu0 0
        %817 = vmatmul.mubr.bf16.gmra.mrb[0].mxu0 %v779
        %v818 = vpop.f32.mrb[0].mxu0
        %v819 = vadd.f32 0.0, %v818
        %v820 = vpop.f32.mrb[0].mxu0
        %v821 = vpop.f32.mrb[0].mxu0
        %v822 = vpop.f32.mrb[0].mxu0
        %823 = vdwg.mxu0
        %v825 = vsel %vm555, %v663, 0
        %v828 = vsel %vm619, %v664, 0
        %830 = vmatprep.subr.bf16.mxu0 0
        %831 = vmatpush1.bf16.msra.mxu0 %v828
        %832 = vmatprep.subr.bf16.mxu0 0
        %833 = vmatpush1.bf16.msra.mxu0 0
        %834 = vmatprep.subr.bf16.mxu0 0
        %835 = vmatpush1.bf16.msra.mxu0 0
        %836 = vmatprep.subr.bf16.mxu0 0
        %837 = vmatpush1.bf16.msra.mxu0 0
        %838 = vmatprep.subr.bf16.mxu0 0
        %839 = vmatpush1.bf16.msra.mxu0 0
        %840 = vmatprep.subr.bf16.mxu0 0
        %841 = vmatpush1.bf16.msra.mxu0 0
        %842 = vmatprep.subr.bf16.mxu0 0
        %843 = vmatpush1.bf16.msra.mxu0 0
        %844 = vmatprep.subr.bf16.mxu0 0
        %845 = vmatpush1.bf16.msra.mxu0 0
        %846 = vmatprep.subr.bf16.mxu0 0
        %847 = vmatpush1.bf16.msra.mxu0 0
        %848 = vmatprep.subr.bf16.mxu0 0
        %849 = vmatpush1.bf16.msra.mxu0 0
        %850 = vmatprep.subr.bf16.mxu0 0
        %851 = vmatpush1.bf16.msra.mxu0 0
        %852 = vmatprep.subr.bf16.mxu0 0
        %853 = vmatpush1.bf16.msra.mxu0 0
        %854 = vmatprep.subr.bf16.mxu0 0
        %855 = vmatpush1.bf16.msra.mxu0 0
        %856 = vmatprep.subr.bf16.mxu0 0
        %857 = vmatpush1.bf16.msra.mxu0 0
        %858 = vmatprep.subr.bf16.mxu0 0
        %859 = vmatpush1.bf16.msra.mxu0 0
        %860 = vmatprep.subr.bf16.mxu0 0
        %861 = vmatpush1.bf16.msra.mxu0 0
        %862 = vmatprep.mubr.bf16.mxu0 0
        %863 = vmatmul.mubr.bf16.gmra.mrb[0].mxu0 %v825
        %v864 = vpop.f32.mrb[0].mxu0
        %v865 = vadd.f32 %v819, %v864
        %v866 = vpop.f32.mrb[0].mxu0
        %v867 = vpop.f32.mrb[0].mxu0
        %v868 = vpop.f32.mrb[0].mxu0
        %869 = vdwg.mxu0
        %870 = vrot.lane.b32.xlu0 %v551, 112
        %v871 = vpop.permute.xlu0 %870
        %872 = vrot.lane.b32.xlu0 %v551, 80
        %v873 = vpop.permute.xlu0 %872
        %v875 = vsel %vm555, %v871, 0
        %v878 = vsel %vm555, %v873, 0
        %880 = vmatprep.subr.bf16.mxu0 0
        %881 = vmatpush1.bf16.xpose.msra.mxu0 %v878
        %882 = vmatprep.subr.bf16.mxu0 0
        %883 = vmatpush1.bf16.xpose.msra.mxu0 0
        %884 = vmatprep.subr.bf16.mxu0 0
        %885 = vmatpush1.bf16.xpose.msra.mxu0 0
        %886 = vmatprep.subr.bf16.mxu0 0
        %887 = vmatpush1.bf16.xpose.msra.mxu0 0
        %888 = vmatprep.subr.bf16.mxu0 0
        %889 = vmatpush1.bf16.xpose.msra.mxu0 0
        %890 = vmatprep.subr.bf16.mxu0 0
        %891 = vmatpush1.bf16.xpose.msra.mxu0 0
        %892 = vmatprep.subr.bf16.mxu0 0
        %893 = vmatpush1.bf16.xpose.msra.mxu0 0
        %894 = vmatprep.subr.bf16.mxu0 0
        %895 = vmatpush1.bf16.xpose.msra.mxu0 0
        %896 = vmatprep.subr.bf16.mxu0 0
        %897 = vmatpush1.bf16.xpose.msra.mxu0 0
        %898 = vmatprep.subr.bf16.mxu0 0
        %899 = vmatpush1.bf16.xpose.msra.mxu0 0
        %900 = vmatprep.subr.bf16.mxu0 0
        %901 = vmatpush1.bf16.xpose.msra.mxu0 0
        %902 = vmatprep.subr.bf16.mxu0 0
        %903 = vmatpush1.bf16.xpose.msra.mxu0 0
        %904 = vmatprep.subr.bf16.mxu0 0
        %905 = vmatpush1.bf16.xpose.msra.mxu0 0
        %906 = vmatprep.subr.bf16.mxu0 0
        %907 = vmatpush1.bf16.xpose.msra.mxu0 0
        %908 = vmatprep.subr.bf16.mxu0 0
        %909 = vmatpush1.bf16.xpose.msra.mxu0 0
        %910 = vmatprep.subr.bf16.mxu0 0
        %911 = vmatpush1.bf16.xpose.msra.mxu0 0
        %912 = vmatprep.mubr.bf16.mxu0 0
        %913 = vmatmul.mubr.bf16.gmra.mrb[0].mxu0 %v875
        %v914 = vpop.f32.mrb[0].mxu0
        %v915 = vadd.f32 0.0, %v914
        %v916 = vpop.f32.mrb[0].mxu0
        %v917 = vpop.f32.mrb[0].mxu0
        %v918 = vpop.f32.mrb[0].mxu0
        %919 = vdwg.mxu0
        %v920 = vsel %vm555, %v915, -inf
        %921 = vmax.xlane.f32.xlu0 %v920
        %v922 = vpop.xlane.xlu0 %921
        %v923 = vsub.f32 %v915, %v922
        %v924 = vmul.f32 %v923, 1.442695
        %v925 = vpow.pop %v924
        %v926 = vsel %vm555, %v925, 0.0
        %927 = vadd.xlane.f32.xlu0 %v926
        %v928 = vpop.xlane.xlu0 %927
        %v929 = vrcp.pop %v928
        %v930 = vmul.f32 %v925, %v929
        %v931 = vpack.c.bf16 %v930, %v930
        %932 = vrot.lane.b32.xlu0 %v551, 48
        %v933 = vpop.permute.xlu0 %932
        %v935 = vsel %vm555, %v931, 0
        %v938 = vsel %vm619, %v933, 0
        %940 = vmatprep.subr.bf16.mxu0 0
        %941 = vmatpush1.bf16.msra.mxu0 %v938
        %942 = vmatprep.subr.bf16.mxu0 0
        %943 = vmatpush1.bf16.msra.mxu0 0
        %944 = vmatprep.subr.bf16.mxu0 0
        %945 = vmatpush1.bf16.msra.mxu0 0
        %946 = vmatprep.subr.bf16.mxu0 0
        %947 = vmatpush1.bf16.msra.mxu0 0
        %948 = vmatprep.subr.bf16.mxu0 0
        %949 = vmatpush1.bf16.msra.mxu0 0
        %950 = vmatprep.subr.bf16.mxu0 0
        %951 = vmatpush1.bf16.msra.mxu0 0
        %952 = vmatprep.subr.bf16.mxu0 0
        %953 = vmatpush1.bf16.msra.mxu0 0
        %954 = vmatprep.subr.bf16.mxu0 0
        %955 = vmatpush1.bf16.msra.mxu0 0
        %956 = vmatprep.subr.bf16.mxu0 0
        %957 = vmatpush1.bf16.msra.mxu0 0
        %958 = vmatprep.subr.bf16.mxu0 0
        %959 = vmatpush1.bf16.msra.mxu0 0
        %960 = vmatprep.subr.bf16.mxu0 0
        %961 = vmatpush1.bf16.msra.mxu0 0
        %962 = vmatprep.subr.bf16.mxu0 0
        %963 = vmatpush1.bf16.msra.mxu0 0
        %964 = vmatprep.subr.bf16.mxu0 0
        %965 = vmatpush1.bf16.msra.mxu0 0
        %966 = vmatprep.subr.bf16.mxu0 0
        %967 = vmatpush1.bf16.msra.mxu0 0
        %968 = vmatprep.subr.bf16.mxu0 0
        %969 = vmatpush1.bf16.msra.mxu0 0
        %970 = vmatprep.subr.bf16.mxu0 0
        %971 = vmatpush1.bf16.msra.mxu0 0
        %972 = vmatprep.mubr.bf16.mxu0 0
        %973 = vmatmul.mubr.bf16.gmra.mrb[0].mxu0 %v935
        %v974 = vpop.f32.mrb[0].mxu0
        %v975 = vadd.f32 0.0, %v974
        %v976 = vpop.f32.mrb[0].mxu0
        %v977 = vpop.f32.mrb[0].mxu0
        %v978 = vpop.f32.mrb[0].mxu0
        %979 = vdwg.mxu0
        %v980 = vpack.c.bf16 %v975, %v975
        %s981 = scalar_lea.vmem %s3, 8
        %v982 = vld [vmem:[%s981] sm:$0xf]
        %v984 = vsel %vm555, %v980, 0
        %v987 = vsel %vm619, %v982, 0
        %989 = vmatprep.subr.bf16.mxu0 0
        %990 = vmatpush1.bf16.msra.mxu0 %v987
        %991 = vmatprep.subr.bf16.mxu0 0
        %992 = vmatpush1.bf16.msra.mxu0 0
        %993 = vmatprep.subr.bf16.mxu0 0
        %994 = vmatpush1.bf16.msra.mxu0 0
        %995 = vmatprep.subr.bf16.mxu0 0
        %996 = vmatpush1.bf16.msra.mxu0 0
        %997 = vmatprep.subr.bf16.mxu0 0
        %998 = vmatpush1.bf16.msra.mxu0 0
        %999 = vmatprep.subr.bf16.mxu0 0
        %1000 = vmatpush1.bf16.msra.mxu0 0
        %1001 = vmatprep.subr.bf16.mxu0 0
        %1002 = vmatpush1.bf16.msra.mxu0 0
        %1003 = vmatprep.subr.bf16.mxu0 0
        %1004 = vmatpush1.bf16.msra.mxu0 0
        %1005 = vmatprep.subr.bf16.mxu0 0
        %1006 = vmatpush1.bf16.msra.mxu0 0
        %1007 = vmatprep.subr.bf16.mxu0 0
        %1008 = vmatpush1.bf16.msra.mxu0 0
        %1009 = vmatprep.subr.bf16.mxu0 0
        %1010 = vmatpush1.bf16.msra.mxu0 0
        %1011 = vmatprep.subr.bf16.mxu0 0
        %1012 = vmatpush1.bf16.msra.mxu0 0
        %1013 = vmatprep.subr.bf16.mxu0 0
        %1014 = vmatpush1.bf16.msra.mxu0 0
        %1015 = vmatprep.subr.bf16.mxu0 0
        %1016 = vmatpush1.bf16.msra.mxu0 0
        %1017 = vmatprep.subr.bf16.mxu0 0
        %1018 = vmatpush1.bf16.msra.mxu0 0
        %1019 = vmatprep.subr.bf16.mxu0 0
        %1020 = vmatpush1.bf16.msra.mxu0 0
        %1021 = vmatprep.mubr.bf16.mxu0 0
        %1022 = vmatmul.mubr.bf16.gmra.mrb[0].mxu0 %v984
        %v1023 = vpop.f32.mrb[0].mxu0
        %v1024 = vadd.f32 0.0, %v1023
        %v1025 = vpop.f32.mrb[0].mxu0
        %v1026 = vpop.f32.mrb[0].mxu0
        %v1027 = vpop.f32.mrb[0].mxu0
        %1028 = vdwg.mxu0
        %v1029 = vadd.f32 %v865, %v1024
        %1030 = vrot.lane.b32.xlu0 %v551, 104
        %v1031 = vpop.permute.xlu0 %1030
        %1032 = vrot.lane.b32.xlu0 %v551, 72
        %v1033 = vpop.permute.xlu0 %1032
        %v1035 = vsel %vm555, %v1031, 0
        %v1038 = vsel %vm555, %v1033, 0
        %1040 = vmatprep.subr.bf16.mxu0 0
        %1041 = vmatpush1.bf16.xpose.msra.mxu0 %v1038
        %1042 = vmatprep.subr.bf16.mxu0 0
        %1043 = vmatpush1.bf16.xpose.msra.mxu0 0
        %1044 = vmatprep.subr.bf16.mxu0 0
        %1045 = vmatpush1.bf16.xpose.msra.mxu0 0
        %1046 = vmatprep.subr.bf16.mxu0 0
        %1047 = vmatpush1.bf16.xpose.msra.mxu0 0
        %1048 = vmatprep.subr.bf16.mxu0 0
        %1049 = vmatpush1.bf16.xpose.msra.mxu0 0
        %1050 = vmatprep.subr.bf16.mxu0 0
        %1051 = vmatpush1.bf16.xpose.msra.mxu0 0
        %1052 = vmatprep.subr.bf16.mxu0 0
        %1053 = vmatpush1.bf16.xpose.msra.mxu0 0
        %1054 = vmatprep.subr.bf16.mxu0 0
        %1055 = vmatpush1.bf16.xpose.msra.mxu0 0
        %1056 = vmatprep.subr.bf16.mxu0 0
        %1057 = vmatpush1.bf16.xpose.msra.mxu0 0
        %1058 = vmatprep.subr.bf16.mxu0 0
        %1059 = vmatpush1.bf16.xpose.msra.mxu0 0
        %1060 = vmatprep.subr.bf16.mxu0 0
        %1061 = vmatpush1.bf16.xpose.msra.mxu0 0
        %1062 = vmatprep.subr.bf16.mxu0 0
        %1063 = vmatpush1.bf16.xpose.msra.mxu0 0
        %1064 = vmatprep.subr.bf16.mxu0 0
        %1065 = vmatpush1.bf16.xpose.msra.mxu0 0
        %1066 = vmatprep.subr.bf16.mxu0 0
        %1067 = vmatpush1.bf16.xpose.msra.mxu0 0
        %1068 = vmatprep.subr.bf16.mxu0 0
        %1069 = vmatpush1.bf16.xpose.msra.mxu0 0
        %1070 = vmatprep.subr.bf16.mxu0 0
        %1071 = vmatpush1.bf16.xpose.msra.mxu0 0
        %1072 = vmatprep.mubr.bf16.mxu0 0
        %1073 = vmatmul.mubr.bf16.gmra.mrb[0].mxu0 %v1035
        %v1074 = vpop.f32.mrb[0].mxu0
        %v1075 = vadd.f32 0.0, %v1074
        %v1076 = vpop.f32.mrb[0].mxu0
        %v1077 = vpop.f32.mrb[0].mxu0
        %v1078 = vpop.f32.mrb[0].mxu0
        %1079 = vdwg.mxu0
        %v1080 = vsel %vm555, %v1075, -inf
        %1081 = vmax.xlane.f32.xlu0 %v1080
        %v1082 = vpop.xlane.xlu0 %1081
        %v1083 = vsub.f32 %v1075, %v1082
        %v1084 = vmul.f32 %v1083, 1.442695
        %v1085 = vpow.pop %v1084
        %v1086 = vsel %vm555, %v1085, 0.0
        %1087 = vadd.xlane.f32.xlu0 %v1086
        %v1088 = vpop.xlane.xlu0 %1087
        %v1089 = vrcp.pop %v1088
        %v1090 = vmul.f32 %v1085, %v1089
        %v1091 = vpack.c.bf16 %v1090, %v1090
        %1092 = vrot.lane.b32.xlu0 %v551, 40
        %v1093 = vpop.permute.xlu0 %1092
        %v1095 = vsel %vm555, %v1091, 0
        %v1098 = vsel %vm619, %v1093, 0
        %1100 = vmatprep.subr.bf16.mxu0 0
        %1101 = vmatpush1.bf16.msra.mxu0 %v1098
        %1102 = vmatprep.subr.bf16.mxu0 0
        %1103 = vmatpush1.bf16.msra.mxu0 0
        %1104 = vmatprep.subr.bf16.mxu0 0
        %1105 = vmatpush1.bf16.msra.mxu0 0
        %1106 = vmatprep.subr.bf16.mxu0 0
        %1107 = vmatpush1.bf16.msra.mxu0 0
        %1108 = vmatprep.subr.bf16.mxu0 0
        %1109 = vmatpush1.bf16.msra.mxu0 0
        %1110 = vmatprep.subr.bf16.mxu0 0
        %1111 = vmatpush1.bf16.msra.mxu0 0
        %1112 = vmatprep.subr.bf16.mxu0 0
        %1113 = vmatpush1.bf16.msra.mxu0 0
        %1114 = vmatprep.subr.bf16.mxu0 0
        %1115 = vmatpush1.bf16.msra.mxu0 0
        %1116 = vmatprep.subr.bf16.mxu0 0
        %1117 = vmatpush1.bf16.msra.mxu0 0
        %1118 = vmatprep.subr.bf16.mxu0 0
        %1119 = vmatpush1.bf16.msra.mxu0 0
        %1120 = vmatprep.subr.bf16.mxu0 0
        %1121 = vmatpush1.bf16.msra.mxu0 0
        %1122 = vmatprep.subr.bf16.mxu0 0
        %1123 = vmatpush1.bf16.msra.mxu0 0
        %1124 = vmatprep.subr.bf16.mxu0 0
        %1125 = vmatpush1.bf16.msra.mxu0 0
        %1126 = vmatprep.subr.bf16.mxu0 0
        %1127 = vmatpush1.bf16.msra.mxu0 0
        %1128 = vmatprep.subr.bf16.mxu0 0
        %1129 = vmatpush1.bf16.msra.mxu0 0
        %1130 = vmatprep.subr.bf16.mxu0 0
        %1131 = vmatpush1.bf16.msra.mxu0 0
        %1132 = vmatprep.mubr.bf16.mxu0 0
        %1133 = vmatmul.mubr.bf16.gmra.mrb[0].mxu0 %v1095
        %v1134 = vpop.f32.mrb[0].mxu0
        %v1135 = vadd.f32 0.0, %v1134
        %v1136 = vpop.f32.mrb[0].mxu0
        %v1137 = vpop.f32.mrb[0].mxu0
        %v1138 = vpop.f32.mrb[0].mxu0
        %1139 = vdwg.mxu0
        %v1140 = vpack.c.bf16 %v1135, %v1135
        %s1141 = scalar_lea.vmem %s3, 12
        %v1142 = vld [vmem:[%s1141] sm:$0xf]
        %v1144 = vsel %vm555, %v1140, 0
        %v1147 = vsel %vm619, %v1142, 0
        %1149 = vmatprep.subr.bf16.mxu0 0
        %1150 = vmatpush1.bf16.msra.mxu0 %v1147
        %1151 = vmatprep.subr.bf16.mxu0 0
        %1152 = vmatpush1.bf16.msra.mxu0 0
        %1153 = vmatprep.subr.bf16.mxu0 0
        %1154 = vmatpush1.bf16.msra.mxu0 0
        %1155 = vmatprep.subr.bf16.mxu0 0
        %1156 = vmatpush1.bf16.msra.mxu0 0
        %1157 = vmatprep.subr.bf16.mxu0 0
        %1158 = vmatpush1.bf16.msra.mxu0 0
        %1159 = vmatprep.subr.bf16.mxu0 0
        %1160 = vmatpush1.bf16.msra.mxu0 0
        %1161 = vmatprep.subr.bf16.mxu0 0
        %1162 = vmatpush1.bf16.msra.mxu0 0
        %1163 = vmatprep.subr.bf16.mxu0 0
        %1164 = vmatpush1.bf16.msra.mxu0 0
        %1165 = vmatprep.subr.bf16.mxu0 0
        %1166 = vmatpush1.bf16.msra.mxu0 0
        %1167 = vmatprep.subr.bf16.mxu0 0
        %1168 = vmatpush1.bf16.msra.mxu0 0
        %1169 = vmatprep.subr.bf16.mxu0 0
        %1170 = vmatpush1.bf16.msra.mxu0 0
        %1171 = vmatprep.subr.bf16.mxu0 0
        %1172 = vmatpush1.bf16.msra.mxu0 0
        %1173 = vmatprep.subr.bf16.mxu0 0
        %1174 = vmatpush1.bf16.msra.mxu0 0
        %1175 = vmatprep.subr.bf16.mxu0 0
        %1176 = vmatpush1.bf16.msra.mxu0 0
        %1177 = vmatprep.subr.bf16.mxu0 0
        %1178 = vmatpush1.bf16.msra.mxu0 0
        %1179 = vmatprep.subr.bf16.mxu0 0
        %1180 = vmatpush1.bf16.msra.mxu0 0
        %1181 = vmatprep.mubr.bf16.mxu0 0
        %1182 = vmatmul.mubr.bf16.gmra.mrb[0].mxu0 %v1144
        %v1183 = vpop.f32.mrb[0].mxu0
        %v1184 = vadd.f32 0.0, %v1183
        %v1185 = vpop.f32.mrb[0].mxu0
        %v1186 = vpop.f32.mrb[0].mxu0
        %v1187 = vpop.f32.mrb[0].mxu0
        %1188 = vdwg.mxu0
        %v1189 = vadd.f32 %v1029, %v1184
        %v1190 = vadd.f32 %v452, %v1189
        %v1191 = vld [vmem:[%s4] sm:$0x1]
        %v1193 = vlaneseq
        %v1194 = vshrl.u32 %v1193, 7
        %v1195 = vsub.s32 0, %v1194
        %v1196 = vrot.slane %v1191, %v1195
        %v1198 = vadd.f32 %v1190, %v1196
        %v1199 = vld [vmem:[%s11] sm:$0x1]
        %v1200 = vld [vmem:[%s12] sm:$0x1]
        %v1201 = vsel %vm455, %v1198, 0.0
        %1202 = vadd.xlane.f32.xlu0 %v1201
        %v1203 = vpop.xlane.xlu0 %1202
        %v1204 = vmul.f32 %v1203, %v459
        %v1205 = vsub.f32 %v1198, %v1204
        %v1206 = vmul.f32 %v1205, %v1205
        %v1207 = vsel %vm455, %v1206, 0.0
        %1208 = vadd.xlane.f32.xlu0 %v1207
        %v1209 = vpop.xlane.xlu0 %1208
        %v1210 = vmul.f32 %v1209, %v459
        %v1211 = vadd.f32 %v1210, 1e-05
        %v1212 = vrsqrt.pop %v1211
        %v1213 = vmul.f32 %v1205, %v1212
        %v1215 = vlaneseq
        %v1216 = vshrl.u32 %v1215, 7
        %v1217 = vsub.s32 0, %v1216
        %v1218 = vrot.slane %v1199, %v1217
        %v1220 = vmul.f32 %v1213, %v1218
        %v1222 = vlaneseq
        %v1223 = vshrl.u32 %v1222, 7
        %v1224 = vsub.s32 0, %v1223
        %v1225 = vrot.slane %v1200, %v1224
        %v1227 = vadd.f32 %v1220, %v1225
        %v1228 = vpack.c.bf16 %v1227, %v1227
        %v1229 = vld [vmem:[#allocation2] sm:$0xf]
        %v1230 = vld [vmem:[#allocation2 + $0x4] sm:$0xf]
        %v1231 = vld [vmem:[#allocation2 + $0x8] sm:$0xf]
        %v1232 = vld [vmem:[#allocation2 + $0xc] sm:$0xf]
        %v1233 = vld [vmem:[%s6] sm:$0x1]
        %v1235 = vlaneseq
        %v1236 = vshrl.u32 %v1235, 7
        %v1237 = vsub.s32 0, %v1236
        %v1238 = vrot.slane %v1233, %v1237
        %v1244 = vunpack.c.l.b16 %v1229
        %v1245 = vunpack.c.l.b16 %v1230
        %v1246 = vunpack.c.l.b16 %v1231
        %v1247 = vunpack.c.l.b16 %v1232
        %v1248 = vpack.c.b16 %v1245, %v1244
        %v1249 = vpack.c.b16 %v1247, %v1246
        %v1253 = vsel %vm455, %v1228, 0
        %1255 = vmatprep.subr.bf16.mxu0 0
        %1256 = vmatpush1.bf16.msra.mxu0 %v1248
        %1257 = vmatprep.subr.bf16.mxu0 0
        %1258 = vmatpush1.bf16.msra.mxu0 %v1249
        %1259 = vmatprep.subr.bf16.mxu0 0
        %1260 = vmatpush1.bf16.msra.mxu0 0
        %1261 = vmatprep.subr.bf16.mxu0 0
        %1262 = vmatpush1.bf16.msra.mxu0 0
        %1263 = vmatprep.subr.bf16.mxu0 0
        %1264 = vmatpush1.bf16.msra.mxu0 0
        %1265 = vmatprep.subr.bf16.mxu0 0
        %1266 = vmatpush1.bf16.msra.mxu0 0
        %1267 = vmatprep.subr.bf16.mxu0 0
        %1268 = vmatpush1.bf16.msra.mxu0 0
        %1269 = vmatprep.subr.bf16.mxu0 0
        %1270 = vmatpush1.bf16.msra.mxu0 0
        %1271 = vmatprep.subr.bf16.mxu0 0
        %1272 = vmatpush1.bf16.msra.mxu0 0
        %1273 = vmatprep.subr.bf16.mxu0 0
        %1274 = vmatpush1.bf16.msra.mxu0 0
        %1275 = vmatprep.subr.bf16.mxu0 0
        %1276 = vmatpush1.bf16.msra.mxu0 0
        %1277 = vmatprep.subr.bf16.mxu0 0
        %1278 = vmatpush1.bf16.msra.mxu0 0
        %1279 = vmatprep.subr.bf16.mxu0 0
        %1280 = vmatpush1.bf16.msra.mxu0 0
        %1281 = vmatprep.subr.bf16.mxu0 0
        %1282 = vmatpush1.bf16.msra.mxu0 0
        %1283 = vmatprep.subr.bf16.mxu0 0
        %1284 = vmatpush1.bf16.msra.mxu0 0
        %1285 = vmatprep.subr.bf16.mxu0 0
        %1286 = vmatpush1.bf16.msra.mxu0 0
        %1287 = vmatprep.mubr.bf16.mxu0 0
        %1288 = vmatmul.mubr.bf16.gmra.mrb[0].mxu0 %v1253
        %v1289 = vpop.f32.mrb[0].mxu0
        %v1290 = vadd.f32 %v1238, %v1289
        %v1291 = vpop.f32.mrb[0].mxu0
        %v1292 = vpop.f32.mrb[0].mxu0
        %v1293 = vpop.f32.mrb[0].mxu0
        %1294 = vdwg.mxu0
        %v1295 = vmax.f32 %v1290, 0.0
        %v1296 = vpack.c.bf16 %v1295, %v1295
        %v1297 = vld [vmem:[%s7] sm:$0xf]
        %v1298 = vld [vmem:[%s7 + $0x4] sm:$0xf]
        %v1299 = vld [vmem:[%s7 + $0x8] sm:$0xf]
        %v1300 = vld [vmem:[%s7 + $0xc] sm:$0xf]
        %v1301 = vld [vmem:[%s7 + $0x10] sm:$0xf]
        %v1302 = vld [vmem:[%s7 + $0x14] sm:$0xf]
        %v1303 = vld [vmem:[%s7 + $0x18] sm:$0xf]
        %v1304 = vld [vmem:[%s7 + $0x1c] sm:$0xf]
        %v1305 = vld [vmem:[%s8] sm:$0x1]
        %v1307 = vlaneseq
        %v1308 = vshrl.u32 %v1307, 7
        %v1309 = vsub.s32 0, %v1308
        %v1310 = vrot.slane %v1305, %v1309
        %v1320 = vunpack.c.l.b16 %v1297
        %v1321 = vunpack.c.l.b16 %v1298
        %v1322 = vunpack.c.l.b16 %v1299
        %v1323 = vunpack.c.l.b16 %v1300
        %v1324 = vunpack.c.l.b16 %v1301
        %v1325 = vunpack.c.l.b16 %v1302
        %v1326 = vunpack.c.l.b16 %v1303
        %v1327 = vunpack.c.l.b16 %v1304
        %v1328 = vpack.c.b16 %v1321, %v1320
        %v1329 = vpack.c.b16 %v1323, %v1322
        %v1330 = vpack.c.b16 %v1325, %v1324
        %v1331 = vpack.c.b16 %v1327, %v1326
        %vm1336 = vcmask 523264
        %v1338 = vsel %vm1336, %v1296, 0
        %1340 = vmatprep.subr.bf16.mxu0 0
        %1341 = vmatpush1.bf16.msra.mxu0 %v1328
        %1342 = vmatprep.subr.bf16.mxu0 0
        %1343 = vmatpush1.bf16.msra.mxu0 %v1329
        %1344 = vmatprep.subr.bf16.mxu0 0
        %1345 = vmatpush1.bf16.msra.mxu0 %v1330
        %1346 = vmatprep.subr.bf16.mxu0 0
        %1347 = vmatpush1.bf16.msra.mxu0 %v1331
        %1348 = vmatprep.subr.bf16.mxu0 0
        %1349 = vmatpush1.bf16.msra.mxu0 0
        %1350 = vmatprep.subr.bf16.mxu0 0
        %1351 = vmatpush1.bf16.msra.mxu0 0
        %1352 = vmatprep.subr.bf16.mxu0 0
        %1353 = vmatpush1.bf16.msra.mxu0 0
        %1354 = vmatprep.subr.bf16.mxu0 0
        %1355 = vmatpush1.bf16.msra.mxu0 0
        %1356 = vmatprep.subr.bf16.mxu0 0
        %1357 = vmatpush1.bf16.msra.mxu0 0
        %1358 = vmatprep.subr.bf16.mxu0 0
        %1359 = vmatpush1.bf16.msra.mxu0 0
        %1360 = vmatprep.subr.bf16.mxu0 0
        %1361 = vmatpush1.bf16.msra.mxu0 0
        %1362 = vmatprep.subr.bf16.mxu0 0
        %1363 = vmatpush1.bf16.msra.mxu0 0
        %1364 = vmatprep.subr.bf16.mxu0 0
        %1365 = vmatpush1.bf16.msra.mxu0 0
        %1366 = vmatprep.subr.bf16.mxu0 0
        %1367 = vmatpush1.bf16.msra.mxu0 0
        %1368 = vmatprep.subr.bf16.mxu0 0
        %1369 = vmatpush1.bf16.msra.mxu0 0
        %1370 = vmatprep.subr.bf16.mxu0 0
        %1371 = vmatpush1.bf16.msra.mxu0 0
        %1372 = vmatprep.mubr.bf16.mxu0 0
        %1373 = vmatmul.mubr.bf16.gmra.mrb[0].mxu0 %v1338
        %v1374 = vpop.f32.mrb[0].mxu0
        %v1375 = vadd.f32 %v1310, %v1374
        %v1376 = vpop.f32.mrb[0].mxu0
        %v1377 = vpop.f32.mrb[0].mxu0
        %v1378 = vpop.f32.mrb[0].mxu0
        %1379 = vdwg.mxu0
        %v1380 = vadd.f32 %v1198, %v1375
        %1381 = vst.msk [vmem:[%s446] sm:$0xff] %vm455, %v1380
        %s1382 = sand.u32 %s314, 1
        %s1383 = scalar_lea.sflag [#allocation4], %s1382
        %s1384 = sand.u32 %s314, 1
        %s1385 = smul.addr %s1384, 8
        %s1386 = scalar_lea.vmem [#allocation5], %s1385
        // Predicated region
        $region77: #{tpu_custom_call.1} parent=71 // pred_check
          %p1387 = pneg %p324
        $region78: #{tpu_custom_call.1} parent=71 // pred_check_branch
          %1389 = sbr.rel (%p1387) target = $region80
        $region79: #{tpu_custom_call.1} parent=71 // pred_region
          %s1391 = ssub.s32 128, 128
          %1392 = vsyncadd %s1383, %s1391
          %s1393 = smul.addr %s28, 128
          %s1394 = scalar_lea.hbm %s13, %s1393
          %s1396 = sshll.u32 %s1386, 4
          %s1397 = int_to_ptr.vmem [resolvable:$true] %s1396
          %1399 = dma.vmem_to_hbm [thread:$0]  %s1397, 128, %s1394, %s1383
        $region80: #{tpu_custom_call.1} parent=71 // pred_fallthru
          _
      $region72: #{tpu_custom_call.1} parent=5 // pred_fallthru
        _
      %p1400 = scmp.le.s32.totalorder 2, %s23
      // Predicated region
      $region81: #{tpu_custom_call.1} parent=5 // pred_check
        %p1401 = pneg %p1400
      $region82: #{tpu_custom_call.1} parent=5 // pred_check_branch
        %1403 = sbr.rel (%p1401) target = $region84
      $region83: #{tpu_custom_call.1} parent=5 // pred_region
        %s1404 = ssub.s32 %s23, 2
        // Predicated region
        $region85: #{tpu_custom_call.1} parent=83 // pred_check
          %p1405 = pneg %p330
        $region86: #{tpu_custom_call.1} parent=83 // pred_check_branch
          %1407 = sbr.rel (%p1405) target = $region88
        $region87: #{tpu_custom_call.1} parent=83 // pred_region
          %s1408 = sand.u32 %s315, 1
          %s1409 = scalar_lea.sflag [#allocation4], %s1408
          %s1410 = sand.u32 %s315, 1
          %s1411 = smul.addr %s1410, 8
          %s1412 = scalar_lea.vmem [#allocation5], %s1411
          %1413 = dma.done %s1409, 128
        $region88: #{tpu_custom_call.1} parent=83 // pred_fallthru
          _
      $region84: #{tpu_custom_call.1} parent=5 // pred_fallthru
        _
    $region6: #{tpu_custom_call.1} parent=1 // loop_footer
      %s27 = sadd.s32 1, %s23
    $region7: #{tpu_custom_call.1} parent=1 // loop_footer_branch
      %22 = sbr.rel target = $region3
    $region8: #{tpu_custom_call.1} parent=1 // loop_exit
      _
    %1414 = vsyncpa [#allocation3], 1
    %s1415 = scalar_lea.sflag [#allocation3], 1
    %1416 = vsyncpa %s1415, 1
    %1417 = vsyncpa [#allocation4], 1
    %s1418 = scalar_lea.sflag [#allocation4], 1
    %1419 = vsyncpa %s1418, 1

</llo_original>
